<compile_context>
chip_gen: v7x
topology: tpu7x:2x2x1
jax: 0.10.0
libtpu: 0.0.40
codegen_flags: <defaults>
</compile_context>

<pallas_src>
import functools
import math

import jax
import jax.numpy as jnp
from jax.experimental import pallas as pl
from jax.experimental.pallas import tpu as pltpu


# ---------------------------------------------------------------------------
# Per-generation VMEM budget
# ---------------------------------------------------------------------------
def _vmem_limit_bytes():
    cap = 64 * 1024 * 1024  # conservative fallback (v7x physical VMEM per TC)
    try:
        cap = int(pltpu.get_tpu_info().vmem_capacity_bytes)
    except Exception:
        pass
    # leave headroom; ~100 MiB on 128 MiB parts, ~48 MiB on v7x
    return max(min(cap - 16 * 1024 * 1024, 100 * 1024 * 1024), 32 * 1024 * 1024)


# ---------------------------------------------------------------------------
# Tile-size selection (VMEM-budget aware, >=2 grid steps preferred)
# ---------------------------------------------------------------------------
def _pick_deconv_row_tile(NH, W, Cin, Cout, itemsize, vmem_limit):
    # Input block second-to-last dim is TR*W: keep it a multiple of 8 (16 for bf16).
    align = 16 if itemsize < 4 else 8
    base = align // math.gcd(W, align)

    def est(t):
        return (2 * t * W * Cin * itemsize               # input block (double buffered)
                + t * W * 4 * Cout * 4                   # f32 matmul result
                + 2 * t * 2 * W * 2 * Cout * itemsize    # output block (double buffered)
                + 2 * Cin * 4 * Cout * itemsize)         # weights

    budget = max(int(0.6 * vmem_limit), 1 << 20)
    tmax = max(base, pl.cdiv(NH, base) * base)
    cands = list(range(base, tmax + 1, base))
    ok = [t for t in cands if est(t) <= budget] or [base]
    pref = [t for t in ok if pl.cdiv(NH, t) >= 2] or ok
    return max(pref)


def _pick_conv_row_tile(H2, W2, Cu, Cl, Co, itemsize, vmem_limit, per_tap):
    # TRC must be a multiple of 8 so the 8-row halo BlockSpec index map is exact.
    align = 16 if itemsize < 4 else 8
    Wp = W2 + 2

    def est(t):
        io = 2 * (t + 8) * Wp * (Cu + Cl) * itemsize      # main + halo inputs (2 buffers)
        win = (t + 2) * Wp * (Cu + Cl) * itemsize         # in-VMEM windows
        tmp = t * W2 * (max(Cu, Cl) if per_tap else 9 * (Cu + Cl)) * itemsize
        acc = t * W2 * Co * 4
        outb = 2 * t * W2 * Co * itemsize
        wts = 2 * 9 * (Cu + Cl) * Co * itemsize
        return io + win + tmp + acc + outb + wts

    budget = max(int(0.6 * vmem_limit), 1 << 20)
    tmax = max(align, pl.cdiv(H2, align) * align)
    cands = list(range(align, tmax + 1, align))
    ok = [t for t in cands if est(t) <= budget] or [align]
    pref = [t for t in ok if pl.cdiv(H2, t) >= 2] or ok
    return max(pref)


# ---------------------------------------------------------------------------
# Kernel 1: ConvTranspose2d(k=2, s=2, p=0).
# out[n, 2*ih+kh, 2*iw+kw, co] = bias[co] + sum_ci x[n, ih, iw, ci] * W[ci, co, kh, kw]
# Single MXU matmul (Cin -> 4*Cout, columns ordered (kh, kw, co)); the result is stored
# directly in (row, kh, w, (kw, co)) order so no HBM de-interleave pass is needed.
# ---------------------------------------------------------------------------
def _deconv2x2_kernel(x_ref, w_ref, b_ref, o_ref):
    # x_ref: (TR*W, Cin); w_ref: (Cin, 4*Cout); b_ref: (1, 4*Cout) f32
    # o_ref: (TR, 2, W, 2*Cout)
    TR, _, W, C2 = o_ref.shape  # C2 = 2*Cout, packed (kw, co)
    y = jnp.dot(x_ref[...], w_ref[...], preferred_element_type=jnp.float32) + b_ref[...]
    o_ref[:, 0, :, :] = y[:, :C2].reshape(TR, W, C2).astype(o_ref.dtype)
    o_ref[:, 1, :, :] = y[:, C2:].reshape(TR, W, C2).astype(o_ref.dtype)


def deconv2x2_stride2(x_nhwc, w_pt, b, *, compute_dtype=jnp.float32):
    # x_nhwc: (N, H, W, Cin); w_pt: PyTorch ConvTranspose2d weight (Cin, Cout, 2, 2); b: (Cout,)
    N, H, W, Cin = x_nhwc.shape
    Cout = w_pt.shape[1]
    NH = N * H
    isz = jnp.dtype(compute_dtype).itemsize
    vlim = _vmem_limit_bytes()

    TR = _pick_deconv_row_tile(NH, W, Cin, Cout, isz, vlim)
    nb = pl.cdiv(NH, TR)

    xm = x_nhwc.reshape(NH * W, Cin).astype(compute_dtype)
    if nb * TR != NH:  # keep all input blocks in-bounds (partial output blocks are masked)
        xm = jnp.pad(xm, ((0, (nb * TR - NH) * W), (0, 0)))

    # (ci, co, kh, kw) -> (ci, (kh, kw, co))
    w4 = jnp.transpose(w_pt, (0, 2, 3, 1)).reshape(Cin, 4 * Cout).astype(compute_dtype)
    b4 = jnp.tile(b.astype(jnp.float32), 4).reshape(1, 4 * Cout)

    ym = pl.pallas_call(
        _deconv2x2_kernel,
        out_shape=jax.ShapeDtypeStruct((NH, 2, W, 2 * Cout), compute_dtype),
        grid=(nb,),
        in_specs=[
            pl.BlockSpec((TR * W, Cin), lambda i: (i, 0)),
            pl.BlockSpec((Cin, 4 * Cout), lambda i: (0, 0)),
            pl.BlockSpec((1, 4 * Cout), lambda i: (0, 0)),
        ],
        out_specs=pl.BlockSpec((TR, 2, W, 2 * Cout), lambda i: (i, 0, 0, 0)),
        compiler_params=pltpu.CompilerParams(
            dimension_semantics=("parallel",),
            vmem_limit_bytes=vlim,
        ),
    )(xm, w4, b4)

    # contiguity-preserving reshape: (N*H, kh, W, (kw, co)) -> (N, 2H, 2W, Cout)
    return ym.reshape(N, 2 * H, 2 * W, Cout)


# ---------------------------------------------------------------------------
# Kernel 2: concat(channel) + Conv2d(3x3, stride 1, pad 1) + bias + ReLU, fused.
# The channel concat is never materialized (split u / low weights). The row halo (+/-1)
# comes from an 8-row halo block instead of re-reading a whole neighbouring row block.
#  * per_tap=True  : 9 accumulating matmuls per source (production channel counts).
#  * per_tap=False : 9-tap lane concat + one big-K matmul per source (tiny channels).
# ---------------------------------------------------------------------------
def _conv3x3_relu_kernel(um_ref, uh_ref, lm_ref, lh_ref, wu_ref, wl_ref, b_ref,
                         o_ref, *, per_tap):
    # um/lm: (TRC, W2+2, C) padded main row block; uh/lh: (8, W2+2, C) halo (2 rows used)
    # wu/wl: (9, C, Co) if per_tap else (9*C, Co); b: (1, Co) f32; o: (TRC, W2, Co)
    TRC, W2, Co = o_ref.shape
    u = jnp.concatenate([um_ref[...], uh_ref[0:2, :, :]], axis=0)    # (TRC+2, W2+2, Cu)
    lo = jnp.concatenate([lm_ref[...], lh_ref[0:2, :, :]], axis=0)   # (TRC+2, W2+2, Cl)

    def taps(x):
        return [x[kh:kh + TRC, kw:kw + W2, :] for kh in range(3) for kw in range(3)]

    if per_tap:
        acc = None
        for w_ref, x in ((wu_ref, u), (wl_ref, lo)):
            for i, t in enumerate(taps(x)):
                d = jnp.dot(t.reshape(TRC * W2, t.shape[-1]), w_ref[i],
                            preferred_element_type=jnp.float32)
                acc = d if acc is None else acc + d
    else:
        xu = jnp.concatenate(taps(u), axis=-1)
        xl = jnp.concatenate(taps(lo), axis=-1)
        acc = jnp.dot(xu.reshape(TRC * W2, xu.shape[-1]), wu_ref[...],
                      preferred_element_type=jnp.float32)
        acc = acc + jnp.dot(xl.reshape(TRC * W2, xl.shape[-1]), wl_ref[...],
                            preferred_element_type=jnp.float32)

    y = jnp.maximum(acc + b_ref[...], 0.0)
    o_ref[...] = y.reshape(TRC, W2, Co).astype(o_ref.dtype)


def conv3x3_relu_fused_concat(u_nhwc, low_nhwc, w_pt, b, *, compute_dtype=jnp.float32,
                              per_tap=None, out_dtype=None):
    # u_nhwc: (N, 2H, 2W, Cu) = up(high); low_nhwc: (N, 2H, 2W, Cl)
    # w_pt: PyTorch Conv2d weight (Co, Cu+Cl, 3, 3); b: (Co,)
    N, H2, W2, Cu = u_nhwc.shape
    _, _, _, Cl = low_nhwc.shape
    Co = w_pt.shape[0]
    assert w_pt.shape[1] == Cu + Cl, (w_pt.shape, Cu, Cl)
    out_dtype = compute_dtype if out_dtype is None else out_dtype
    if per_tap is None:
        per_tap = (Cu + Cl) >= 128

    isz = jnp.dtype(compute_dtype).itemsize
    vlim = _vmem_limit_bytes()
    TRC = _pick_conv_row_tile(H2, W2, Cu, Cl, Co, isz, vlim, per_tap)
    nb = pl.cdiv(H2, TRC)
    grid = (N, nb)
    Wp = W2 + 2

    # SAME padding (1 zero row/col each side); extra bottom zero rows keep the main and
    # 8-row halo blocks in bounds for every grid step (including non-divisible H2).
    # TODO(synk): move this padding in-kernel (and fuse the deconv) to drop the pad passes.
    bot = nb * TRC + 8 - (H2 + 1)
    pad = ((0, 0), (1, bot), (1, 1), (0, 0))
    u_p = jnp.pad(u_nhwc.astype(compute_dtype), pad)
    l_p = jnp.pad(low_nhwc.astype(compute_dtype), pad)

    # (co, ci, kh, kw) -> (kh, kw, ci, co), split into u / low channel groups
    wt = jnp.transpose(w_pt, (2, 3, 1, 0)).astype(compute_dtype)   # (3, 3, Cu+Cl, Co)
    if per_tap:
        w_u = wt[:, :, :Cu, :].reshape(9, Cu, Co)
        w_l = wt[:, :, Cu:, :].reshape(9, Cl, Co)
        wu_spec = pl.BlockSpec((9, Cu, Co), lambda n, j: (0, 0, 0))
        wl_spec = pl.BlockSpec((9, Cl, Co), lambda n, j: (0, 0, 0))
    else:
        w_u = wt[:, :, :Cu, :].reshape(9 * Cu, Co)
        w_l = wt[:, :, Cu:, :].reshape(9 * Cl, Co)
        wu_spec = pl.BlockSpec((9 * Cu, Co), lambda n, j: (0, 0))
        wl_spec = pl.BlockSpec((9 * Cl, Co), lambda n, j: (0, 0))
    b2 = b.astype(jnp.float32).reshape(1, Co)

    hs = TRC // 8  # halo block index stride (TRC is a multiple of 8 by construction)

    def main_spec(ch):
        return pl.BlockSpec((None, TRC, Wp, ch), lambda n, j: (n, j, 0, 0))

    def halo_spec(ch):
        return pl.BlockSpec((None, 8, Wp, ch), lambda n, j: (n, (j + 1) * hs, 0, 0))

    kernel = functools.partial(_conv3x3_relu_kernel, per_tap=per_tap)
    out = pl.pallas_call(
        kernel,
        out_shape=jax.ShapeDtypeStruct((N, H2, W2, Co), out_dtype),
        grid=grid,
        in_specs=[
            main_spec(Cu), halo_spec(Cu),
            main_spec(Cl), halo_spec(Cl),
            wu_spec, wl_spec,
            pl.BlockSpec((1, Co), lambda n, j: (0, 0)),
        ],
        # NOTE: with toy Cout (<128) stores are lane-masked; real UNet stages
        # (Cout a multiple of 128) give lane-dense unmasked stores.
        out_specs=pl.BlockSpec((None, TRC, W2, Co), lambda n, j: (n, j, 0, 0)),
        compiler_params=pltpu.CompilerParams(
            dimension_semantics=("parallel", "parallel"),
            vmem_limit_bytes=vlim,
        ),
    )(u_p, u_p, l_p, l_p, w_u, w_l, b2)
    return out


# ---------------------------------------------------------------------------
# unetUp.forward (is_deconv=True, n_concat=2)
# ---------------------------------------------------------------------------
def unet_up_forward(params, high_feature_nchw, *low_features_nchw,
                    compute_dtype=jnp.float32, per_tap=None):
    assert low_features_nchw, "unetUp forward expects at least one low-level feature"
    hf = jnp.transpose(high_feature_nchw, (0, 2, 3, 1))               # NCHW -> NHWC
    u = deconv2x2_stride2(hf, params["up_w"], params["up_b"],
                          compute_dtype=compute_dtype)
    lows = [jnp.transpose(lf, (0, 2, 3, 1)) for lf in low_features_nchw]
    low = lows[0] if len(lows) == 1 else jnp.concatenate(lows, axis=-1)
    y = conv3x3_relu_fused_concat(u, low, params["conv_w"], params["conv_b"],
                                  compute_dtype=compute_dtype, per_tap=per_tap)
    return jnp.transpose(y, (0, 3, 1, 2))                             # NHWC -> NCHW


# pure-JAX reference (independent of the kernels) for a sanity check
def _ref_forward(params, high, *lows):
    hf = jnp.transpose(high, (0, 2, 3, 1))
    N, H, W, _ = hf.shape
    w = params["up_w"]
    Cout = w.shape[1]
    y = jnp.einsum("nhwc,cokl->nhkwlo", hf, w, precision=jax.lax.Precision.HIGHEST)
    y = y.reshape(N, 2 * H, 2 * W, Cout) + params["up_b"]
    parts = [y] + [jnp.transpose(lf, (0, 2, 3, 1)) for lf in lows]
    x = jnp.concatenate(parts, axis=-1)
    wk = jnp.transpose(params["conv_w"], (2, 3, 1, 0))                # HWIO
    out = jax.lax.conv_general_dilated(
        x, wk, (1, 1), "SAME",
        dimension_numbers=("NHWC", "HWIO", "NHWC"),
        precision=jax.lax.Precision.HIGHEST,
    )
    out = jnp.maximum(out + params["conv_b"], 0.0)
    return jnp.transpose(out, (0, 3, 1, 2))


if __name__ == "__main__":
    key = jax.random.PRNGKey(0)
    in_size, out_size = 8, 4          # n_concat=2 -> conv in channels = in_size
    N, H, W = 2, 16, 16               # high-level feature spatial size (low feature is 2x)
    k1, k2, k3, k4, k5, k6 = jax.random.split(key, 6)

    high = jax.random.normal(k1, (N, in_size, H, W), jnp.float32)
    low = jax.random.normal(k2, (N, in_size - out_size, 2 * H, 2 * W), jnp.float32)

    # deterministic kaiming-style init (shapes match the PyTorch module's params)
    fan_up = in_size * 2 * 2
    up_w = jax.random.normal(k3, (in_size, out_size, 2, 2), jnp.float32) * (2.0 / fan_up) ** 0.5
    up_b = jax.random.normal(k4, (out_size,), jnp.float32) * 0.01
    conv_in = in_size                  # in_size + (n_concat - 2) * out_size, n_concat = 2
    fan_c = conv_in * 3 * 3
    conv_w = jax.random.normal(k5, (out_size, conv_in, 3, 3), jnp.float32) * (2.0 / fan_c) ** 0.5
    conv_b = jax.random.normal(k6, (out_size,), jnp.float32) * 0.01
    params = dict(up_w=up_w, up_b=up_b, conv_w=conv_w, conv_b=conv_b)

    ref = _ref_forward(params, high, low)

    # big-K (tiny-channel) conv path, f32 compute
    out_wide = unet_up_forward(params, high, low, per_tap=False)
    jax.block_until_ready(out_wide)
    assert out_wide.shape == (N, out_size, 2 * H, 2 * W), out_wide.shape
    assert jnp.allclose(out_wide, ref, rtol=2e-4, atol=2e-4), \
        float(jnp.max(jnp.abs(out_wide - ref)))

    # per-tap accumulating-matmul conv path (what production channel counts use)
    out_tap = unet_up_forward(params, high, low, per_tap=True)
    jax.block_until_ready(out_tap)
    assert jnp.allclose(out_tap, ref, rtol=2e-4, atol=2e-4), \
        float(jnp.max(jnp.abs(out_tap - ref)))

    # bf16 compute (halved HBM traffic, f32 accumulation) -- loose numerical check
    out_bf16 = unet_up_forward(params, high, low, compute_dtype=jnp.bfloat16)
    jax.block_until_ready(out_bf16)
    o16 = out_bf16.astype(jnp.float32)
    assert bool(jnp.all(jnp.isfinite(o16)))
    assert float(jnp.max(jnp.abs(o16 - ref))) < 0.25

    print("KERNEL_OK")
</pallas_src>

<mosaic_0001>
module attributes {stable_mosaic.version = 11 : i64} {
  func.func @_deconv2x2_kernel(%arg0: i32, %arg1: memref<496x8xf32, #tpu.memory_space<vmem>>, %arg2: memref<8x16xf32, #tpu.memory_space<vmem>>, %arg3: memref<1x16xf32, #tpu.memory_space<vmem>>, %arg4: memref<31x2x16x8xf32, #tpu.memory_space<vmem>>) attributes {dimension_semantics = [#tpu.dimension_semantics<parallel>], iteration_bounds = array<i64: 2>, scalar_prefetch = 0 : i64, scratch_operands = 0 : i64, tpu.core_type = #tpu.core_type<tc>, window_params = [{transform_indices = @transform_0, window_bounds = array<i64: 496, 8>}, {pipeline_mode = #tpu.pipeline_mode<synchronous>, transform_indices = @transform_1, window_bounds = array<i64: 8, 16>}, {pipeline_mode = #tpu.pipeline_mode<synchronous>, transform_indices = @transform_2, window_bounds = array<i64: 1, 16>}, {transform_indices = @transform_3, window_bounds = array<i64: 31, 2, 16, 8>}]} {
    %c0 = arith.constant 0 : index
    %c0_0 = arith.constant 0 : index
    %0 = vector.load %arg1[%c0, %c0_0] : memref<496x8xf32, #tpu.memory_space<vmem>>, vector<496x8xf32>
    %c0_1 = arith.constant 0 : index
    %c0_2 = arith.constant 0 : index
    %1 = vector.load %arg2[%c0_1, %c0_2] : memref<8x16xf32, #tpu.memory_space<vmem>>, vector<8x16xf32>
    %cst = arith.constant dense<0.000000e+00> : vector<496x16xf32>
    %2 = tpu.matmul %0, %1, %cst {dimension_numbers = #tpu.dot_dimension_numbers<[1], [0], [0], [1], [0, 0, 1, 1], [], []>} : vector<496x8xf32>, vector<8x16xf32>, vector<496x16xf32> -> vector<496x16xf32>
    %c0_3 = arith.constant 0 : index
    %c0_4 = arith.constant 0 : index
    %3 = vector.load %arg3[%c0_3, %c0_4] : memref<1x16xf32, #tpu.memory_space<vmem>>, vector<1x16xf32>
    %4 = vector.broadcast %3 : vector<1x16xf32> to vector<496x16xf32>
    %5 = arith.addf %2, %4 : vector<496x16xf32>
    %6 = vector.extract_strided_slice %5 {offsets = [0, 0], sizes = [496, 8], strides = [1, 1]} : vector<496x16xf32> to vector<496x8xf32>
    %7 = vector.shape_cast %6 : vector<496x8xf32> to vector<31x16x8xf32>
    %c0_5 = arith.constant 0 : index
    %c0_6 = arith.constant 0 : index
    %c0_7 = arith.constant 0 : index
    %c0_8 = arith.constant 0 : index
    %8 = vector.load %arg4[%c0_5, %c0_6, %c0_7, %c0_8] : memref<31x2x16x8xf32, #tpu.memory_space<vmem>>, vector<31x1x16x8xf32>
    %9 = vector.shape_cast %8 : vector<31x1x16x8xf32> to vector<31x16x8xf32>
    %10 = vector.shape_cast %7 : vector<31x16x8xf32> to vector<31x1x16x8xf32>
    tpu.vector_store %arg4[%c0_5, %c0_6, %c0_7, %c0_8], %10 {strides = array<i32>} : memref<31x2x16x8xf32, #tpu.memory_space<vmem>>, vector<31x1x16x8xf32>,
    %11 = vector.extract_strided_slice %5 {offsets = [0, 8], sizes = [496, 8], strides = [1, 1]} : vector<496x16xf32> to vector<496x8xf32>
    %12 = vector.shape_cast %11 : vector<496x8xf32> to vector<31x16x8xf32>
    %c0_9 = arith.constant 0 : index
    %c1 = arith.constant 1 : index
    %c0_10 = arith.constant 0 : index
    %c0_11 = arith.constant 0 : index
    %13 = vector.load %arg4[%c0_9, %c1, %c0_10, %c0_11] : memref<31x2x16x8xf32, #tpu.memory_space<vmem>>, vector<31x1x16x8xf32>
    %14 = vector.shape_cast %13 : vector<31x1x16x8xf32> to vector<31x16x8xf32>
    %15 = vector.shape_cast %12 : vector<31x16x8xf32> to vector<31x1x16x8xf32>
    tpu.vector_store %arg4[%c0_9, %c1, %c0_10, %c0_11], %15 {strides = array<i32>} : memref<31x2x16x8xf32, #tpu.memory_space<vmem>>, vector<31x1x16x8xf32>,
    return
  }
  func.func @transform_0(%arg0: i32) -> (i32, i32) {
    %c0_i32 = arith.constant 0 : i32
    %c0_i32_0 = arith.constant 0 : i32
    return %arg0, %c0_i32 : i32, i32
  }
  func.func @transform_1(%arg0: i32) -> (i32, i32) {
    %c0_i32 = arith.constant 0 : i32
    %c0_i32_0 = arith.constant 0 : i32
    %c0_i32_1 = arith.constant 0 : i32
    return %c0_i32, %c0_i32_0 : i32, i32
  }
  func.func @transform_2(%arg0: i32) -> (i32, i32) {
    %c0_i32 = arith.constant 0 : i32
    %c0_i32_0 = arith.constant 0 : i32
    %c0_i32_1 = arith.constant 0 : i32
    return %c0_i32, %c0_i32_0 : i32, i32
  }
  func.func @transform_3(%arg0: i32) -> (i32, i32, i32, i32) {
    %c0_i32 = arith.constant 0 : i32
    %c0_i32_0 = arith.constant 0 : i32
    %c0_i32_1 = arith.constant 0 : i32
    %c0_i32_2 = arith.constant 0 : i32
    return %arg0, %c0_i32, %c0_i32_0, %c0_i32_1 : i32, i32, i32, i32
  }
}

</mosaic_0001>

<llo_original>
// kernel: tpu_custom_call.1
$region0: #{tpu_custom_call.1}
  #allocation0 [shape = 'u32[]', space=smem, size = 0x4, offset = 0x4, fixed_abs, tag = 'smem constant byte address 0x4 - core index']
  #allocation1 [shape = 'u32[144,128]{1,0:T(1,128)}', space=vmem, size = 0x12000, scoped, tag = 'internal scratch']
  %s0 = inlined_call_operand.vmem [shape: f32[992,8], index: 0, kind: input, shape index: {}]
  %s1 = inlined_call_operand.vmem [shape: f32[8,16], index: 1, kind: input, shape index: {}]
  %s2 = inlined_call_operand.vmem [shape: f32[1,16], index: 2, kind: input, shape index: {}]
  %s3 = inlined_call_operand.vmem [shape: f32[32,2,16,8], index: 3, kind: output, shape index: {}]
  %s4 = sld [smem:[#allocation0]]
  $region93: #{tpu_custom_call.1} parent=0
    _
  %s6 = ssub.s32 1, %s4
  %s7 = scalar_select 0, %s6, %s4
  $region1: #{tpu_custom_call.1} parent=0
    #allocation2 [shape = 'u8[1015808]{0}', space=vmem, size = 0xf8000, scoped, tag = 'output window, operand 0']
    loop: start=0, step=1, limit=4
    $region2: #{tpu_custom_call.1} parent=1 // loop_pre_header
      _
    $region3: #{tpu_custom_call.1} parent=1 // loop_header
      %s9 = sphi 0, %s13
      %p10 = scmp.ge.s32.totalorder %s9, 4
      %s19 = sphi 0, %s21
      %s22 = sphi 0, %s19
      %s23 = sphi 0, %s22
      %s39 = sphi 0, %s23
      %s43 = sphi 0, %s43
      %s45 = sphi 0, %s43
      %s46 = sphi 0, %s45
      %s60 = sphi 0, %s46
      %s64 = sphi 0, %s64
      %s66 = sphi 0, %s64
      %s67 = sphi 0, %s66
      %s81 = sphi 0, %s67
      %s87 = sphi 0, %s89
      %s90 = sphi 0, %s87
      %s91 = sphi 0, %s90
      %s107 = sphi 0, %s91
    $region4: #{tpu_custom_call.1} parent=1 // loop_header_branch
      %12 = sbr.rel (%p10) target = $region8
    $region5: #{tpu_custom_call.1} parent=1 // loop_body
      %s14 = ssub.s32 %s9, 1
      %s15 = ssub.s32 %s9, 2
      %s16 = sadd.s32 %s9, 1
      %s17 = ssub.s32 %s9, %s16
      %p18 = scmp.eq.s32.totalorder %s17, 0
      %s20 = sadd.s32 %s19, 1
      %s21 = scalar_select %p18, %s19, %s20
      %p24 = pneg %p18
      %p25 = scmp.eq.s32.totalorder %s9, 1
      %p26 = por %p24, %p25
      %p27 = scmp.ne.s32.totalorder %s19, %s22
      %p28 = scmp.eq.s32.totalorder %s9, 0
      %p29 = por %p27, %p28
      %p30 = scmp.ne.s32.totalorder %s19, %s22
      %p31 = scmp.eq.s32.totalorder %s14, 1
      %p32 = por %p30, %p31
      %p33 = scmp.ne.s32.totalorder %s22, %s23
      %p34 = scmp.eq.s32.totalorder %s14, 0
      %p35 = por %p33, %p34
      %p36 = scmp.ne.s32.totalorder %s22, %s23
      %p37 = scmp.eq.s32.totalorder %s15, 1
      %p38 = por %p36, %p37
      %p40 = scmp.ne.s32.totalorder %s23, %s39
      %p41 = scmp.eq.s32.totalorder %s15, 0
      %p42 = por %p40, %p41
      %s44 = sadd.s32 %s43, 1
      %p47 = scmp.eq.s32.totalorder %s9, 1
      %p48 = scmp.ne.s32.totalorder %s43, %s45
      %p49 = scmp.eq.s32.totalorder %s9, 0
      %p50 = por %p48, %p49
      %p51 = scmp.ne.s32.totalorder %s43, %s45
      %p52 = scmp.eq.s32.totalorder %s14, 1
      %p53 = por %p51, %p52
      %p54 = scmp.ne.s32.totalorder %s45, %s46
      %p55 = scmp.eq.s32.totalorder %s14, 0
      %p56 = por %p54, %p55
      %p57 = scmp.ne.s32.totalorder %s45, %s46
      %p58 = scmp.eq.s32.totalorder %s15, 1
      %p59 = por %p57, %p58
      %p61 = scmp.ne.s32.totalorder %s46, %s60
      %p62 = scmp.eq.s32.totalorder %s15, 0
      %p63 = por %p61, %p62
      %s65 = sadd.s32 %s64, 1
      %p68 = scmp.eq.s32.totalorder %s9, 1
      %p69 = scmp.ne.s32.totalorder %s64, %s66
      %p70 = scmp.eq.s32.totalorder %s9, 0
      %p71 = por %p69, %p70
      %p72 = scmp.ne.s32.totalorder %s64, %s66
      %p73 = scmp.eq.s32.totalorder %s14, 1
      %p74 = por %p72, %p73
      %p75 = scmp.ne.s32.totalorder %s66, %s67
      %p76 = scmp.eq.s32.totalorder %s14, 0
      %p77 = por %p75, %p76
      %p78 = scmp.ne.s32.totalorder %s66, %s67
      %p79 = scmp.eq.s32.totalorder %s15, 1
      %p80 = por %p78, %p79
      %p82 = scmp.ne.s32.totalorder %s67, %s81
      %p83 = scmp.eq.s32.totalorder %s15, 0
      %p84 = por %p82, %p83
      %s85 = ssub.s32 %s9, %s16
      %p86 = scmp.eq.s32.totalorder %s85, 0
      %s88 = sadd.s32 %s87, 1
      %s89 = scalar_select %p86, %s87, %s88
      %p92 = pneg %p86
      %p93 = scmp.eq.s32.totalorder %s9, 1
      %p94 = por %p92, %p93
      %p95 = scmp.ne.s32.totalorder %s87, %s90
      %p96 = scmp.eq.s32.totalorder %s9, 0
      %p97 = por %p95, %p96
      %p98 = scmp.ne.s32.totalorder %s87, %s90
      %p99 = scmp.eq.s32.totalorder %s14, 1
      %p100 = por %p98, %p99
      %p101 = scmp.ne.s32.totalorder %s90, %s91
      %p102 = scmp.eq.s32.totalorder %s14, 0
      %p103 = por %p101, %p102
      %p104 = scmp.ne.s32.totalorder %s90, %s91
      %p105 = scmp.eq.s32.totalorder %s15, 1
      %p106 = por %p104, %p105
      %p108 = scmp.ne.s32.totalorder %s91, %s107
      %p109 = scmp.eq.s32.totalorder %s15, 0
      %p110 = por %p108, %p109
      %p111 = scmp.le.s32.totalorder 1, %s9
      %p112 = scmp.lt.s32.totalorder %s9, 3
      %p113 = pnand %p111, %p112
      %p114 = pneg %p113
      // Predicated region
      $region9: #{tpu_custom_call.1} parent=5 // pred_check
        _
      $region10: #{tpu_custom_call.1} parent=5 // pred_check_branch
        %116 = sbr.rel (%p113) target = $region12
      $region11: #{tpu_custom_call.1} parent=5 // pred_region
        %s117 = ssub.s32 %s9, 1
        // Predicated region
        $region13: #{tpu_custom_call.1} parent=11 // pred_check
          %p118 = pneg %p56
        $region14: #{tpu_custom_call.1} parent=11 // pred_check_branch
          %120 = sbr.rel (%p118) target = $region16
        $region15: #{tpu_custom_call.1} parent=11 // pred_region
          _
        $region16: #{tpu_custom_call.1} parent=11 // pred_fallthru
          _
        // Predicated region
        $region17: #{tpu_custom_call.1} parent=11 // pred_check
          %p121 = pneg %p77
        $region18: #{tpu_custom_call.1} parent=11 // pred_check_branch
          %123 = sbr.rel (%p121) target = $region20
        $region19: #{tpu_custom_call.1} parent=11 // pred_region
          _
        $region20: #{tpu_custom_call.1} parent=11 // pred_fallthru
          _
      $region12: #{tpu_custom_call.1} parent=5 // pred_fallthru
        _
      %p124 = scmp.lt.s32.totalorder %s9, 2
      // Predicated region
      $region21: #{tpu_custom_call.1} parent=5 // pred_check
        %p125 = pneg %p124
      $region22: #{tpu_custom_call.1} parent=5 // pred_check_branch
        %127 = sbr.rel (%p125) target = $region24
      $region23: #{tpu_custom_call.1} parent=5 // pred_region
        // Predicated region
        $region25: #{tpu_custom_call.1} parent=23 // pred_check
          %p128 = pneg %p29
        $region26: #{tpu_custom_call.1} parent=23 // pred_check_branch
          %130 = sbr.rel (%p128) target = $region28
        $region27: #{tpu_custom_call.1} parent=23 // pred_region
          %s131 = smul.u32 62, %s9
          %p132 = scmp.lt.s32.totalorder %s131, 123
          %s133 = scalar_select %p132, %s131, 123
          %s134 = smul.addr %s133, 8
          %s135 = scalar_lea.vmem %s0, %s134
          %s136 = smul.u32 62, %s9
        $region28: #{tpu_custom_call.1} parent=23 // pred_fallthru
          _
      $region24: #{tpu_custom_call.1} parent=5 // pred_fallthru
        _
      %p137 = scmp.le.s32.totalorder 1, %s9
      %p138 = scmp.lt.s32.totalorder %s9, 3
      %p139 = pnand %p137, %p138
      %p140 = pneg %p139
      // Predicated region
      $region29: #{tpu_custom_call.1} parent=5 // pred_check
        _
      $region30: #{tpu_custom_call.1} parent=5 // pred_check_branch
        %142 = sbr.rel (%p139) target = $region32
      $region31: #{tpu_custom_call.1} parent=5 // pred_region
        %s143 = ssub.s32 %s9, 1
        %s144 = smul.u32 62, %s14
        %p145 = scmp.lt.s32.totalorder %s144, 123
        %s146 = scalar_select %p145, %s144, 123
        %s147 = smul.addr %s146, 8
        %s148 = scalar_lea.vmem %s0, %s147
        %p149 = pneg %p35
        %p150 = pneg %p32
        %p151 = pneg %p56
        %p152 = pneg %p53
        %p153 = pneg %p77
        %p154 = pneg %p74
        %p155 = pneg %p103
        %p156 = pneg %p100
        %s157 = sand.u32 %s90, 1
        %s158 = sand.u32 %s90, 1
        %s159 = smul.addr %s158, 992
        %s160 = scalar_lea.vmem [#allocation2], %s159
        %s161 = smul.u32 62, %s14
        %p162 = scmp.lt.s32.totalorder %s161, 123
        %s163 = scalar_select %p162, %s161, 123
        %s164 = smul.addr %s163, 8
        %s165 = scalar_lea.vmem %s0, %s164
        %s166 = smul.u32 62, %s14
        %s167 = smul.u32 31, %s14
        %s168 = ssub.s32 32, %s167
        %p169 = scmp.lt.s32.totalorder %s168, 31
        %s170 = scalar_select %p169, %s168, 31
        %s171 = smul.u32 128, %s170
        %s172 = smul.u32 %s171, 2
        %s173 = smul.u32 %s172, 2
        %v174 = vld [vmem:[%s165] sm:$0xff]
        %v175 = vld [vmem:[%s165 + $0x8] sm:$0xff]
        %v176 = vld [vmem:[%s165 + $0x10] sm:$0xff]
        %v177 = vld [vmem:[%s165 + $0x18] sm:$0xff]
        %v178 = vld [vmem:[%s165 + $0x20] sm:$0xff]
        %v179 = vld [vmem:[%s165 + $0x28] sm:$0xff]
        %v180 = vld [vmem:[%s165 + $0x30] sm:$0xff]
        %v181 = vld [vmem:[%s165 + $0x38] sm:$0xff]
        %v182 = vld [vmem:[%s165 + $0x40] sm:$0xff]
        %v183 = vld [vmem:[%s165 + $0x48] sm:$0xff]
        %v184 = vld [vmem:[%s165 + $0x50] sm:$0xff]
        %v185 = vld [vmem:[%s165 + $0x58] sm:$0xff]
        %v186 = vld [vmem:[%s165 + $0x60] sm:$0xff]
        %v187 = vld [vmem:[%s165 + $0x68] sm:$0xff]
        %v188 = vld [vmem:[%s165 + $0x70] sm:$0xff]
        %v189 = vld [vmem:[%s165 + $0x78] sm:$0xff]
        %v190 = vld [vmem:[%s165 + $0x80] sm:$0xff]
        %v191 = vld [vmem:[%s165 + $0x88] sm:$0xff]
        %v192 = vld [vmem:[%s165 + $0x90] sm:$0xff]
        %v193 = vld [vmem:[%s165 + $0x98] sm:$0xff]
        %v194 = vld [vmem:[%s165 + $0xa0] sm:$0xff]
        %v195 = vld [vmem:[%s165 + $0xa8] sm:$0xff]
        %v196 = vld [vmem:[%s165 + $0xb0] sm:$0xff]
        %v197 = vld [vmem:[%s165 + $0xb8] sm:$0xff]
        %v198 = vld [vmem:[%s165 + $0xc0] sm:$0xff]
        %v199 = vld [vmem:[%s165 + $0xc8] sm:$0xff]
        %v200 = vld [vmem:[%s165 + $0xd0] sm:$0xff]
        %v201 = vld [vmem:[%s165 + $0xd8] sm:$0xff]
        %v202 = vld [vmem:[%s165 + $0xe0] sm:$0xff]
        %v203 = vld [vmem:[%s165 + $0xe8] sm:$0xff]
        %v204 = vld [vmem:[%s165 + $0xf0] sm:$0xff]
        %v205 = vld [vmem:[%s165 + $0xf8] sm:$0xff]
        %v206 = vld [vmem:[%s165 + $0x100] sm:$0xff]
        %v207 = vld [vmem:[%s165 + $0x108] sm:$0xff]
        %v208 = vld [vmem:[%s165 + $0x110] sm:$0xff]
        %v209 = vld [vmem:[%s165 + $0x118] sm:$0xff]
        %v210 = vld [vmem:[%s165 + $0x120] sm:$0xff]
        %v211 = vld [vmem:[%s165 + $0x128] sm:$0xff]
        %v212 = vld [vmem:[%s165 + $0x130] sm:$0xff]
        %v213 = vld [vmem:[%s165 + $0x138] sm:$0xff]
        %v214 = vld [vmem:[%s165 + $0x140] sm:$0xff]
        %v215 = vld [vmem:[%s165 + $0x148] sm:$0xff]
        %v216 = vld [vmem:[%s165 + $0x150] sm:$0xff]
        %v217 = vld [vmem:[%s165 + $0x158] sm:$0xff]
        %v218 = vld [vmem:[%s165 + $0x160] sm:$0xff]
        %v219 = vld [vmem:[%s165 + $0x168] sm:$0xff]
        %v220 = vld [vmem:[%s165 + $0x170] sm:$0xff]
        %v221 = vld [vmem:[%s165 + $0x178] sm:$0xff]
        %v222 = vld [vmem:[%s165 + $0x180] sm:$0xff]
        %v223 = vld [vmem:[%s165 + $0x188] sm:$0xff]
        %v224 = vld [vmem:[%s165 + $0x190] sm:$0xff]
        %v225 = vld [vmem:[%s165 + $0x198] sm:$0xff]
        %v226 = vld [vmem:[%s165 + $0x1a0] sm:$0xff]
        %v227 = vld [vmem:[%s165 + $0x1a8] sm:$0xff]
        %v228 = vld [vmem:[%s165 + $0x1b0] sm:$0xff]
        %v229 = vld [vmem:[%s165 + $0x1b8] sm:$0xff]
        %v230 = vld [vmem:[%s165 + $0x1c0] sm:$0xff]
        %v231 = vld [vmem:[%s165 + $0x1c8] sm:$0xff]
        %v232 = vld [vmem:[%s165 + $0x1d0] sm:$0xff]
        %v233 = vld [vmem:[%s165 + $0x1d8] sm:$0xff]
        %v234 = vld [vmem:[%s165 + $0x1e0] sm:$0xff]
        %v235 = vld [vmem:[%s165 + $0x1e8] sm:$0xff]
        %v236 = vld [vmem:[%s1] sm:$0xff]
        %v237 = vld [vmem:[%s2] sm:$0x1]
        %v239 = vlaneseq
        %v240 = vshrl.u32 %v239, 7
        %v241 = vsub.s32 0, %v240
        %v242 = vrot.slane %v237, %v241
        %vm244 = vcmask 64512
        %v246 = vsel %vm244, %v174, 0
        %v249 = vsel %vm244, %v175, 0
        %v252 = vsel %vm244, %v176, 0
        %v255 = vsel %vm244, %v177, 0
        %v258 = vsel %vm244, %v178, 0
        %v261 = vsel %vm244, %v179, 0
        %v264 = vsel %vm244, %v180, 0
        %v267 = vsel %vm244, %v181, 0
        %v270 = vsel %vm244, %v182, 0
        %v273 = vsel %vm244, %v183, 0
        %v276 = vsel %vm244, %v184, 0
        %v279 = vsel %vm244, %v185, 0
        %v282 = vsel %vm244, %v186, 0
        %v285 = vsel %vm244, %v187, 0
        %v288 = vsel %vm244, %v188, 0
        %v291 = vsel %vm244, %v189, 0
        %v294 = vsel %vm244, %v190, 0
        %v297 = vsel %vm244, %v191, 0
        %v300 = vsel %vm244, %v192, 0
        %v303 = vsel %vm244, %v193, 0
        %v306 = vsel %vm244, %v194, 0
        %v309 = vsel %vm244, %v195, 0
        %v312 = vsel %vm244, %v196, 0
        %v315 = vsel %vm244, %v197, 0
        %v318 = vsel %vm244, %v198, 0
        %v321 = vsel %vm244, %v199, 0
        %v324 = vsel %vm244, %v200, 0
        %v327 = vsel %vm244, %v201, 0
        %v330 = vsel %vm244, %v202, 0
        %v333 = vsel %vm244, %v203, 0
        %v336 = vsel %vm244, %v204, 0
        %v339 = vsel %vm244, %v205, 0
        %v342 = vsel %vm244, %v206, 0
        %v345 = vsel %vm244, %v207, 0
        %v348 = vsel %vm244, %v208, 0
        %v351 = vsel %vm244, %v209, 0
        %v354 = vsel %vm244, %v210, 0
        %v357 = vsel %vm244, %v211, 0
        %v360 = vsel %vm244, %v212, 0
        %v363 = vsel %vm244, %v213, 0
        %v366 = vsel %vm244, %v214, 0
        %v369 = vsel %vm244, %v215, 0
        %v372 = vsel %vm244, %v216, 0
        %v375 = vsel %vm244, %v217, 0
        %v378 = vsel %vm244, %v218, 0
        %v381 = vsel %vm244, %v219, 0
        %v384 = vsel %vm244, %v220, 0
        %v387 = vsel %vm244, %v221, 0
        %v390 = vsel %vm244, %v222, 0
        %v393 = vsel %vm244, %v223, 0
        %v396 = vsel %vm244, %v224, 0
        %v399 = vsel %vm244, %v225, 0
        %v402 = vsel %vm244, %v226, 0
        %v405 = vsel %vm244, %v227, 0
        %v408 = vsel %vm244, %v228, 0
        %v411 = vsel %vm244, %v229, 0
        %v414 = vsel %vm244, %v230, 0
        %v417 = vsel %vm244, %v231, 0
        %v420 = vsel %vm244, %v232, 0
        %v423 = vsel %vm244, %v233, 0
        %v426 = vsel %vm244, %v234, 0
        %v429 = vsel %vm244, %v235, 0
        %431 = vmatprep.subr.mxu0 0.0
        %432 = vmatpush1.msra.mxu0 %v236
        %433 = vmatprep.subr.mxu0 0.0
        %434 = vmatpush1.msra.mxu0 0.0
        %435 = vmatprep.subr.mxu0 0.0
        %436 = vmatpush1.msra.mxu0 0.0
        %437 = vmatprep.subr.mxu0 0.0
        %438 = vmatpush1.msra.mxu0 0.0
        %439 = vmatprep.subr.mxu0 0.0
        %440 = vmatpush1.msra.mxu0 0.0
        %441 = vmatprep.subr.mxu0 0.0
        %442 = vmatpush1.msra.mxu0 0.0
        %443 = vmatprep.subr.mxu0 0.0
        %444 = vmatpush1.msra.mxu0 0.0
        %445 = vmatprep.subr.mxu0 0.0
        %446 = vmatpush1.msra.mxu0 0.0
        %447 = vmatprep.subr.mxu0 0.0
        %448 = vmatpush1.msra.mxu0 0.0
        %449 = vmatprep.subr.mxu0 0.0
        %450 = vmatpush1.msra.mxu0 0.0
        %451 = vmatprep.subr.mxu0 0.0
        %452 = vmatpush1.msra.mxu0 0.0
        %453 = vmatprep.subr.mxu0 0.0
        %454 = vmatpush1.msra.mxu0 0.0
        %455 = vmatprep.subr.mxu0 0.0
        %456 = vmatpush1.msra.mxu0 0.0
        %457 = vmatprep.subr.mxu0 0.0
        %458 = vmatpush1.msra.mxu0 0.0
        %459 = vmatprep.subr.mxu0 0.0
        %460 = vmatpush1.msra.mxu0 0.0
        %461 = vmatprep.subr.mxu0 0.0
        %462 = vmatpush1.msra.mxu0 0.0
        %463 = vmatprep.subr.mxu0 0.0
        %464 = vmatpush1.msra.mxu0 0.0
        %465 = vmatprep.subr.mxu0 0.0
        %466 = vmatpush1.msra.mxu0 0.0
        %467 = vmatprep.subr.mxu0 0.0
        %468 = vmatpush1.msra.mxu0 0.0
        %469 = vmatprep.subr.mxu0 0.0
        %470 = vmatpush1.msra.mxu0 0.0
        %471 = vmatprep.subr.mxu0 0.0
        %472 = vmatpush1.msra.mxu0 0.0
        %473 = vmatprep.subr.mxu0 0.0
        %474 = vmatpush1.msra.mxu0 0.0
        %475 = vmatprep.subr.mxu0 0.0
        %476 = vmatpush1.msra.mxu0 0.0
        %477 = vmatprep.subr.mxu0 0.0
        %478 = vmatpush1.msra.mxu0 0.0
        %479 = vmatprep.subr.mxu0 0.0
        %480 = vmatpush1.msra.mxu0 0.0
        %481 = vmatprep.subr.mxu0 0.0
        %482 = vmatpush1.msra.mxu0 0.0
        %483 = vmatprep.subr.mxu0 0.0
        %484 = vmatpush1.msra.mxu0 0.0
        %485 = vmatprep.subr.mxu0 0.0
        %486 = vmatpush1.msra.mxu0 0.0
        %487 = vmatprep.subr.mxu0 0.0
        %488 = vmatpush1.msra.mxu0 0.0
        %489 = vmatprep.subr.mxu0 0.0
        %490 = vmatpush1.msra.mxu0 0.0
        %491 = vmatprep.subr.mxu0 0.0
        %492 = vmatpush1.msra.mxu0 0.0
        %493 = vmatprep.subr.mxu0 0.0
        %494 = vmatpush1.msra.mxu0 0.0
        %495 = vmatprep.mubr.f32.mxu0 0.0
        %496 = vmatmul.mubr.f32.gmra.mrb[0].mxu0 %v246
        %v497 = vpop.f32.mrb[0].mxu0
        %v498 = vadd.f32 %v242, %v497
        %v499 = vpop.f32.mrb[0].mxu0
        %500 = vmatprep.mubr.f32.mxu0 0.0
        %501 = vmatmul.mubr.f32.gmra.mrb[0].mxu0 %v249
        %v502 = vpop.f32.mrb[0].mxu0
        %v503 = vadd.f32 %v242, %v502
        %v504 = vpop.f32.mrb[0].mxu0
        %505 = vmatprep.mubr.f32.mxu0 0.0
        %506 = vmatmul.mubr.f32.gmra.mrb[0].mxu0 %v252
        %v507 = vpop.f32.mrb[0].mxu0
        %v508 = vadd.f32 %v242, %v507
        %v509 = vpop.f32.mrb[0].mxu0
        %510 = vmatprep.mubr.f32.mxu0 0.0
        %511 = vmatmul.mubr.f32.gmra.mrb[0].mxu0 %v255
        %v512 = vpop.f32.mrb[0].mxu0
        %v513 = vadd.f32 %v242, %v512
        %v514 = vpop.f32.mrb[0].mxu0
        %515 = vmatprep.mubr.f32.mxu0 0.0
        %516 = vmatmul.mubr.f32.gmra.mrb[0].mxu0 %v258
        %v517 = vpop.f32.mrb[0].mxu0
        %v518 = vadd.f32 %v242, %v517
        %v519 = vpop.f32.mrb[0].mxu0
        %520 = vmatprep.mubr.f32.mxu0 0.0
        %521 = vmatmul.mubr.f32.gmra.mrb[0].mxu0 %v261
        %v522 = vpop.f32.mrb[0].mxu0
        %v523 = vadd.f32 %v242, %v522
        %v524 = vpop.f32.mrb[0].mxu0
        %525 = vmatprep.mubr.f32.mxu0 0.0
        %526 = vmatmul.mubr.f32.gmra.mrb[0].mxu0 %v264
        %v527 = vpop.f32.mrb[0].mxu0
        %v528 = vadd.f32 %v242, %v527
        %v529 = vpop.f32.mrb[0].mxu0
        %530 = vmatprep.mubr.f32.mxu0 0.0
        %531 = vmatmul.mubr.f32.gmra.mrb[0].mxu0 %v267
        %v532 = vpop.f32.mrb[0].mxu0
        %v533 = vadd.f32 %v242, %v532
        %v534 = vpop.f32.mrb[0].mxu0
        %535 = vmatprep.mubr.f32.mxu0 0.0
        %536 = vmatmul.mubr.f32.gmra.mrb[0].mxu0 %v270
        %v537 = vpop.f32.mrb[0].mxu0
        %v538 = vadd.f32 %v242, %v537
        %v539 = vpop.f32.mrb[0].mxu0
        %540 = vmatprep.mubr.f32.mxu0 0.0
        %541 = vmatmul.mubr.f32.gmra.mrb[0].mxu0 %v273
        %v542 = vpop.f32.mrb[0].mxu0
        %v543 = vadd.f32 %v242, %v542
        %v544 = vpop.f32.mrb[0].mxu0
        %545 = vmatprep.mubr.f32.mxu0 0.0
        %546 = vmatmul.mubr.f32.gmra.mrb[0].mxu0 %v276
        %v547 = vpop.f32.mrb[0].mxu0
        %v548 = vadd.f32 %v242, %v547
        %v549 = vpop.f32.mrb[0].mxu0
        %550 = vmatprep.mubr.f32.mxu0 0.0
        %551 = vmatmul.mubr.f32.gmra.mrb[0].mxu0 %v279
        %v552 = vpop.f32.mrb[0].mxu0
        %v553 = vadd.f32 %v242, %v552
        %v554 = vpop.f32.mrb[0].mxu0
        %555 = vmatprep.mubr.f32.mxu0 0.0
        %556 = vmatmul.mubr.f32.gmra.mrb[0].mxu0 %v282
        %v557 = vpop.f32.mrb[0].mxu0
        %v558 = vadd.f32 %v242, %v557
        %v559 = vpop.f32.mrb[0].mxu0
        %560 = vmatprep.mubr.f32.mxu0 0.0
        %561 = vmatmul.mubr.f32.gmra.mrb[0].mxu0 %v285
        %v562 = vpop.f32.mrb[0].mxu0
        %v563 = vadd.f32 %v242, %v562
        %v564 = vpop.f32.mrb[0].mxu0
        %565 = vmatprep.mubr.f32.mxu0 0.0
        %566 = vmatmul.mubr.f32.gmra.mrb[0].mxu0 %v288
        %v567 = vpop.f32.mrb[0].mxu0
        %v568 = vadd.f32 %v242, %v567
        %v569 = vpop.f32.mrb[0].mxu0
        %570 = vmatprep.mubr.f32.mxu0 0.0
        %571 = vmatmul.mubr.f32.gmra.mrb[0].mxu0 %v291
        %v572 = vpop.f32.mrb[0].mxu0
        %v573 = vadd.f32 %v242, %v572
        %v574 = vpop.f32.mrb[0].mxu0
        %575 = vmatprep.mubr.f32.mxu0 0.0
        %576 = vmatmul.mubr.f32.gmra.mrb[0].mxu0 %v294
        %v577 = vpop.f32.mrb[0].mxu0
        %v578 = vadd.f32 %v242, %v577
        %v579 = vpop.f32.mrb[0].mxu0
        %580 = vmatprep.mubr.f32.mxu0 0.0
        %581 = vmatmul.mubr.f32.gmra.mrb[0].mxu0 %v297
        %v582 = vpop.f32.mrb[0].mxu0
        %v583 = vadd.f32 %v242, %v582
        %v584 = vpop.f32.mrb[0].mxu0
        %585 = vmatprep.mubr.f32.mxu0 0.0
        %586 = vmatmul.mubr.f32.gmra.mrb[0].mxu0 %v300
        %v587 = vpop.f32.mrb[0].mxu0
        %v588 = vadd.f32 %v242, %v587
        %v589 = vpop.f32.mrb[0].mxu0
        %590 = vmatprep.mubr.f32.mxu0 0.0
        %591 = vmatmul.mubr.f32.gmra.mrb[0].mxu0 %v303
        %v592 = vpop.f32.mrb[0].mxu0
        %v593 = vadd.f32 %v242, %v592
        %v594 = vpop.f32.mrb[0].mxu0
        %595 = vmatprep.mubr.f32.mxu0 0.0
        %596 = vmatmul.mubr.f32.gmra.mrb[0].mxu0 %v306
        %v597 = vpop.f32.mrb[0].mxu0
        %v598 = vadd.f32 %v242, %v597
        %v599 = vpop.f32.mrb[0].mxu0
        %600 = vmatprep.mubr.f32.mxu0 0.0
        %601 = vmatmul.mubr.f32.gmra.mrb[0].mxu0 %v309
        %v602 = vpop.f32.mrb[0].mxu0
        %v603 = vadd.f32 %v242, %v602
        %v604 = vpop.f32.mrb[0].mxu0
        %605 = vmatprep.mubr.f32.mxu0 0.0
        %606 = vmatmul.mubr.f32.gmra.mrb[0].mxu0 %v312
        %v607 = vpop.f32.mrb[0].mxu0
        %v608 = vadd.f32 %v242, %v607
        %v609 = vpop.f32.mrb[0].mxu0
        %610 = vmatprep.mubr.f32.mxu0 0.0
        %611 = vmatmul.mubr.f32.gmra.mrb[0].mxu0 %v315
        %v612 = vpop.f32.mrb[0].mxu0
        %v613 = vadd.f32 %v242, %v612
        %v614 = vpop.f32.mrb[0].mxu0
        %615 = vmatprep.mubr.f32.mxu0 0.0
        %616 = vmatmul.mubr.f32.gmra.mrb[0].mxu0 %v318
        %v617 = vpop.f32.mrb[0].mxu0
        %v618 = vadd.f32 %v242, %v617
        %v619 = vpop.f32.mrb[0].mxu0
        %620 = vmatprep.mubr.f32.mxu0 0.0
        %621 = vmatmul.mubr.f32.gmra.mrb[0].mxu0 %v321
        %v622 = vpop.f32.mrb[0].mxu0
        %v623 = vadd.f32 %v242, %v622
        %v624 = vpop.f32.mrb[0].mxu0
        %625 = vmatprep.mubr.f32.mxu0 0.0
        %626 = vmatmul.mubr.f32.gmra.mrb[0].mxu0 %v324
        %v627 = vpop.f32.mrb[0].mxu0
        %v628 = vadd.f32 %v242, %v627
        %v629 = vpop.f32.mrb[0].mxu0
        %630 = vmatprep.mubr.f32.mxu0 0.0
        %631 = vmatmul.mubr.f32.gmra.mrb[0].mxu0 %v327
        %v632 = vpop.f32.mrb[0].mxu0
        %v633 = vadd.f32 %v242, %v632
        %v634 = vpop.f32.mrb[0].mxu0
        %635 = vmatprep.mubr.f32.mxu0 0.0
        %636 = vmatmul.mubr.f32.gmra.mrb[0].mxu0 %v330
        %v637 = vpop.f32.mrb[0].mxu0
        %v638 = vadd.f32 %v242, %v637
        %v639 = vpop.f32.mrb[0].mxu0
        %640 = vmatprep.mubr.f32.mxu0 0.0
        %641 = vmatmul.mubr.f32.gmra.mrb[0].mxu0 %v333
        %v642 = vpop.f32.mrb[0].mxu0
        %v643 = vadd.f32 %v242, %v642
        %v644 = vpop.f32.mrb[0].mxu0
        %645 = vmatprep.mubr.f32.mxu0 0.0
        %646 = vmatmul.mubr.f32.gmra.mrb[0].mxu0 %v336
        %v647 = vpop.f32.mrb[0].mxu0
        %v648 = vadd.f32 %v242, %v647
        %v649 = vpop.f32.mrb[0].mxu0
        %650 = vmatprep.mubr.f32.mxu0 0.0
        %651 = vmatmul.mubr.f32.gmra.mrb[0].mxu0 %v339
        %v652 = vpop.f32.mrb[0].mxu0
        %v653 = vadd.f32 %v242, %v652
        %v654 = vpop.f32.mrb[0].mxu0
        %655 = vmatprep.mubr.f32.mxu0 0.0
        %656 = vmatmul.mubr.f32.gmra.mrb[0].mxu0 %v342
        %v657 = vpop.f32.mrb[0].mxu0
        %v658 = vadd.f32 %v242, %v657
        %v659 = vpop.f32.mrb[0].mxu0
        %660 = vmatprep.mubr.f32.mxu0 0.0
        %661 = vmatmul.mubr.f32.gmra.mrb[0].mxu0 %v345
        %v662 = vpop.f32.mrb[0].mxu0
        %v663 = vadd.f32 %v242, %v662
        %v664 = vpop.f32.mrb[0].mxu0
        %665 = vmatprep.mubr.f32.mxu0 0.0
        %666 = vmatmul.mubr.f32.gmra.mrb[0].mxu0 %v348
        %v667 = vpop.f32.mrb[0].mxu0
        %v668 = vadd.f32 %v242, %v667
        %v669 = vpop.f32.mrb[0].mxu0
        %670 = vmatprep.mubr.f32.mxu0 0.0
        %671 = vmatmul.mubr.f32.gmra.mrb[0].mxu0 %v351
        %v672 = vpop.f32.mrb[0].mxu0
        %v673 = vadd.f32 %v242, %v672
        %v674 = vpop.f32.mrb[0].mxu0
        %675 = vmatprep.mubr.f32.mxu0 0.0
        %676 = vmatmul.mubr.f32.gmra.mrb[0].mxu0 %v354
        %v677 = vpop.f32.mrb[0].mxu0
        %v678 = vadd.f32 %v242, %v677
        %v679 = vpop.f32.mrb[0].mxu0
        %680 = vmatprep.mubr.f32.mxu0 0.0
        %681 = vmatmul.mubr.f32.gmra.mrb[0].mxu0 %v357
        %v682 = vpop.f32.mrb[0].mxu0
        %v683 = vadd.f32 %v242, %v682
        %v684 = vpop.f32.mrb[0].mxu0
        %685 = vmatprep.mubr.f32.mxu0 0.0
        %686 = vmatmul.mubr.f32.gmra.mrb[0].mxu0 %v360
        %v687 = vpop.f32.mrb[0].mxu0
        %v688 = vadd.f32 %v242, %v687
        %v689 = vpop.f32.mrb[0].mxu0
        %690 = vmatprep.mubr.f32.mxu0 0.0
        %691 = vmatmul.mubr.f32.gmra.mrb[0].mxu0 %v363
        %v692 = vpop.f32.mrb[0].mxu0
        %v693 = vadd.f32 %v242, %v692
        %v694 = vpop.f32.mrb[0].mxu0
        %695 = vmatprep.mubr.f32.mxu0 0.0
        %696 = vmatmul.mubr.f32.gmra.mrb[0].mxu0 %v366
        %v697 = vpop.f32.mrb[0].mxu0
        %v698 = vadd.f32 %v242, %v697
        %v699 = vpop.f32.mrb[0].mxu0
        %700 = vmatprep.mubr.f32.mxu0 0.0
        %701 = vmatmul.mubr.f32.gmra.mrb[0].mxu0 %v369
        %v702 = vpop.f32.mrb[0].mxu0
        %v703 = vadd.f32 %v242, %v702
        %v704 = vpop.f32.mrb[0].mxu0
        %705 = vmatprep.mubr.f32.mxu0 0.0
        %706 = vmatmul.mubr.f32.gmra.mrb[0].mxu0 %v372
        %v707 = vpop.f32.mrb[0].mxu0
        %v708 = vadd.f32 %v242, %v707
        %v709 = vpop.f32.mrb[0].mxu0
        %710 = vmatprep.mubr.f32.mxu0 0.0
        %711 = vmatmul.mubr.f32.gmra.mrb[0].mxu0 %v375
        %v712 = vpop.f32.mrb[0].mxu0
        %v713 = vadd.f32 %v242, %v712
        %v714 = vpop.f32.mrb[0].mxu0
        %715 = vmatprep.mubr.f32.mxu0 0.0
        %716 = vmatmul.mubr.f32.gmra.mrb[0].mxu0 %v378
        %v717 = vpop.f32.mrb[0].mxu0
        %v718 = vadd.f32 %v242, %v717
        %v719 = vpop.f32.mrb[0].mxu0
        %720 = vmatprep.mubr.f32.mxu0 0.0
        %721 = vmatmul.mubr.f32.gmra.mrb[0].mxu0 %v381
        %v722 = vpop.f32.mrb[0].mxu0
        %v723 = vadd.f32 %v242, %v722
        %v724 = vpop.f32.mrb[0].mxu0
        %725 = vmatprep.mubr.f32.mxu0 0.0
        %726 = vmatmul.mubr.f32.gmra.mrb[0].mxu0 %v384
        %v727 = vpop.f32.mrb[0].mxu0
        %v728 = vadd.f32 %v242, %v727
        %v729 = vpop.f32.mrb[0].mxu0
        %730 = vmatprep.mubr.f32.mxu0 0.0
        %731 = vmatmul.mubr.f32.gmra.mrb[0].mxu0 %v387
        %v732 = vpop.f32.mrb[0].mxu0
        %v733 = vadd.f32 %v242, %v732
        %v734 = vpop.f32.mrb[0].mxu0
        %735 = vmatprep.mubr.f32.mxu0 0.0
        %736 = vmatmul.mubr.f32.gmra.mrb[0].mxu0 %v390
        %v737 = vpop.f32.mrb[0].mxu0
        %v738 = vadd.f32 %v242, %v737
        %v739 = vpop.f32.mrb[0].mxu0
        %740 = vmatprep.mubr.f32.mxu0 0.0
        %741 = vmatmul.mubr.f32.gmra.mrb[0].mxu0 %v393
        %v742 = vpop.f32.mrb[0].mxu0
        %v743 = vadd.f32 %v242, %v742
        %v744 = vpop.f32.mrb[0].mxu0
        %745 = vmatprep.mubr.f32.mxu0 0.0
        %746 = vmatmul.mubr.f32.gmra.mrb[0].mxu0 %v396
        %v747 = vpop.f32.mrb[0].mxu0
        %v748 = vadd.f32 %v242, %v747
        %v749 = vpop.f32.mrb[0].mxu0
        %750 = vmatprep.mubr.f32.mxu0 0.0
        %751 = vmatmul.mubr.f32.gmra.mrb[0].mxu0 %v399
        %v752 = vpop.f32.mrb[0].mxu0
        %v753 = vadd.f32 %v242, %v752
        %v754 = vpop.f32.mrb[0].mxu0
        %755 = vmatprep.mubr.f32.mxu0 0.0
        %756 = vmatmul.mubr.f32.gmra.mrb[0].mxu0 %v402
        %v757 = vpop.f32.mrb[0].mxu0
        %v758 = vadd.f32 %v242, %v757
        %v759 = vpop.f32.mrb[0].mxu0
        %760 = vmatprep.mubr.f32.mxu0 0.0
        %761 = vmatmul.mubr.f32.gmra.mrb[0].mxu0 %v405
        %v762 = vpop.f32.mrb[0].mxu0
        %v763 = vadd.f32 %v242, %v762
        %v764 = vpop.f32.mrb[0].mxu0
        %765 = vmatprep.mubr.f32.mxu0 0.0
        %766 = vmatmul.mubr.f32.gmra.mrb[0].mxu0 %v408
        %v767 = vpop.f32.mrb[0].mxu0
        %v768 = vadd.f32 %v242, %v767
        %v769 = vpop.f32.mrb[0].mxu0
        %770 = vmatprep.mubr.f32.mxu0 0.0
        %771 = vmatmul.mubr.f32.gmra.mrb[0].mxu0 %v411
        %v772 = vpop.f32.mrb[0].mxu0
        %v773 = vadd.f32 %v242, %v772
        %v774 = vpop.f32.mrb[0].mxu0
        %775 = vmatprep.mubr.f32.mxu0 0.0
        %776 = vmatmul.mubr.f32.gmra.mrb[0].mxu0 %v414
        %v777 = vpop.f32.mrb[0].mxu0
        %v778 = vadd.f32 %v242, %v777
        %v779 = vpop.f32.mrb[0].mxu0
        %780 = vmatprep.mubr.f32.mxu0 0.0
        %781 = vmatmul.mubr.f32.gmra.mrb[0].mxu0 %v417
        %v782 = vpop.f32.mrb[0].mxu0
        %v783 = vadd.f32 %v242, %v782
        %v784 = vpop.f32.mrb[0].mxu0
        %785 = vmatprep.mubr.f32.mxu0 0.0
        %786 = vmatmul.mubr.f32.gmra.mrb[0].mxu0 %v420
        %v787 = vpop.f32.mrb[0].mxu0
        %v788 = vadd.f32 %v242, %v787
        %v789 = vpop.f32.mrb[0].mxu0
        %790 = vmatprep.mubr.f32.mxu0 0.0
        %791 = vmatmul.mubr.f32.gmra.mrb[0].mxu0 %v423
        %v792 = vpop.f32.mrb[0].mxu0
        %v793 = vadd.f32 %v242, %v792
        %v794 = vpop.f32.mrb[0].mxu0
        %795 = vmatprep.mubr.f32.mxu0 0.0
        %796 = vmatmul.mubr.f32.gmra.mrb[0].mxu0 %v426
        %v797 = vpop.f32.mrb[0].mxu0
        %v798 = vadd.f32 %v242, %v797
        %v799 = vpop.f32.mrb[0].mxu0
        %800 = vmatprep.mubr.f32.mxu0 0.0
        %801 = vmatmul.mubr.f32.gmra.mrb[0].mxu0 %v429
        %v802 = vpop.f32.mrb[0].mxu0
        %v803 = vadd.f32 %v242, %v802
        %v804 = vpop.f32.mrb[0].mxu0
        %805 = vdwg.mxu0
        %806 = vst.msk [vmem:[%s160] sm:$0xff] %vm244, %v498
        %807 = vst.msk [vmem:[%s160 + $0x8] sm:$0xff] %vm244, %v503
        %808 = vst.msk [vmem:[%s160 + $0x20] sm:$0xff] %vm244, %v508
        %809 = vst.msk [vmem:[%s160 + $0x28] sm:$0xff] %vm244, %v513
        %810 = vst.msk [vmem:[%s160 + $0x40] sm:$0xff] %vm244, %v518
        %811 = vst.msk [vmem:[%s160 + $0x48] sm:$0xff] %vm244, %v523
        %812 = vst.msk [vmem:[%s160 + $0x60] sm:$0xff] %vm244, %v528
        %813 = vst.msk [vmem:[%s160 + $0x68] sm:$0xff] %vm244, %v533
        %814 = vst.msk [vmem:[%s160 + $0x80] sm:$0xff] %vm244, %v538
        %815 = vst.msk [vmem:[%s160 + $0x88] sm:$0xff] %vm244, %v543
        %816 = vst.msk [vmem:[%s160 + $0xa0] sm:$0xff] %vm244, %v548
        %817 = vst.msk [vmem:[%s160 + $0xa8] sm:$0xff] %vm244, %v553
        %818 = vst.msk [vmem:[%s160 + $0xc0] sm:$0xff] %vm244, %v558
        %819 = vst.msk [vmem:[%s160 + $0xc8] sm:$0xff] %vm244, %v563
        %820 = vst.msk [vmem:[%s160 + $0xe0] sm:$0xff] %vm244, %v568
        %821 = vst.msk [vmem:[%s160 + $0xe8] sm:$0xff] %vm244, %v573
        %822 = vst.msk [vmem:[%s160 + $0x100] sm:$0xff] %vm244, %v578
        %823 = vst.msk [vmem:[%s160 + $0x108] sm:$0xff] %vm244, %v583
        %824 = vst.msk [vmem:[%s160 + $0x120] sm:$0xff] %vm244, %v588
        %825 = vst.msk [vmem:[%s160 + $0x128] sm:$0xff] %vm244, %v593
        %826 = vst.msk [vmem:[%s160 + $0x140] sm:$0xff] %vm244, %v598
        %827 = vst.msk [vmem:[%s160 + $0x148] sm:$0xff] %vm244, %v603
        %828 = vst.msk [vmem:[%s160 + $0x160] sm:$0xff] %vm244, %v608
        %829 = vst.msk [vmem:[%s160 + $0x168] sm:$0xff] %vm244, %v613
        %830 = vst.msk [vmem:[%s160 + $0x180] sm:$0xff] %vm244, %v618
        %831 = vst.msk [vmem:[%s160 + $0x188] sm:$0xff] %vm244, %v623
        %832 = vst.msk [vmem:[%s160 + $0x1a0] sm:$0xff] %vm244, %v628
        %833 = vst.msk [vmem:[%s160 + $0x1a8] sm:$0xff] %vm244, %v633
        %834 = vst.msk [vmem:[%s160 + $0x1c0] sm:$0xff] %vm244, %v638
        %835 = vst.msk [vmem:[%s160 + $0x1c8] sm:$0xff] %vm244, %v643
        %836 = vst.msk [vmem:[%s160 + $0x1e0] sm:$0xff] %vm244, %v648
        %837 = vst.msk [vmem:[%s160 + $0x1e8] sm:$0xff] %vm244, %v653
        %838 = vst.msk [vmem:[%s160 + $0x200] sm:$0xff] %vm244, %v658
        %839 = vst.msk [vmem:[%s160 + $0x208] sm:$0xff] %vm244, %v663
        %840 = vst.msk [vmem:[%s160 + $0x220] sm:$0xff] %vm244, %v668
        %841 = vst.msk [vmem:[%s160 + $0x228] sm:$0xff] %vm244, %v673
        %842 = vst.msk [vmem:[%s160 + $0x240] sm:$0xff] %vm244, %v678
        %843 = vst.msk [vmem:[%s160 + $0x248] sm:$0xff] %vm244, %v683
        %844 = vst.msk [vmem:[%s160 + $0x260] sm:$0xff] %vm244, %v688
        %845 = vst.msk [vmem:[%s160 + $0x268] sm:$0xff] %vm244, %v693
        %846 = vst.msk [vmem:[%s160 + $0x280] sm:$0xff] %vm244, %v698
        %847 = vst.msk [vmem:[%s160 + $0x288] sm:$0xff] %vm244, %v703
        %848 = vst.msk [vmem:[%s160 + $0x2a0] sm:$0xff] %vm244, %v708
        %849 = vst.msk [vmem:[%s160 + $0x2a8] sm:$0xff] %vm244, %v713
        %850 = vst.msk [vmem:[%s160 + $0x2c0] sm:$0xff] %vm244, %v718
        %851 = vst.msk [vmem:[%s160 + $0x2c8] sm:$0xff] %vm244, %v723
        %852 = vst.msk [vmem:[%s160 + $0x2e0] sm:$0xff] %vm244, %v728
        %853 = vst.msk [vmem:[%s160 + $0x2e8] sm:$0xff] %vm244, %v733
        %854 = vst.msk [vmem:[%s160 + $0x300] sm:$0xff] %vm244, %v738
        %855 = vst.msk [vmem:[%s160 + $0x308] sm:$0xff] %vm244, %v743
        %856 = vst.msk [vmem:[%s160 + $0x320] sm:$0xff] %vm244, %v748
        %857 = vst.msk [vmem:[%s160 + $0x328] sm:$0xff] %vm244, %v753
        %858 = vst.msk [vmem:[%s160 + $0x340] sm:$0xff] %vm244, %v758
        %859 = vst.msk [vmem:[%s160 + $0x348] sm:$0xff] %vm244, %v763
        %860 = vst.msk [vmem:[%s160 + $0x360] sm:$0xff] %vm244, %v768
        %861 = vst.msk [vmem:[%s160 + $0x368] sm:$0xff] %vm244, %v773
        %862 = vst.msk [vmem:[%s160 + $0x380] sm:$0xff] %vm244, %v778
        %863 = vst.msk [vmem:[%s160 + $0x388] sm:$0xff] %vm244, %v783
        %864 = vst.msk [vmem:[%s160 + $0x3a0] sm:$0xff] %vm244, %v788
        %865 = vst.msk [vmem:[%s160 + $0x3a8] sm:$0xff] %vm244, %v793
        %866 = vst.msk [vmem:[%s160 + $0x3c0] sm:$0xff] %vm244, %v798
        %867 = vst.msk [vmem:[%s160 + $0x3c8] sm:$0xff] %vm244, %v803
        %930 = vrot.lane.b32.xlu0 %v498, 120
        %v931 = vpop.permute.xlu0 %930
        %932 = vrot.lane.b32.xlu0 %v503, 120
        %v933 = vpop.permute.xlu0 %932
        %934 = vrot.lane.b32.xlu0 %v508, 120
        %v935 = vpop.permute.xlu0 %934
        %936 = vrot.lane.b32.xlu0 %v513, 120
        %v937 = vpop.permute.xlu0 %936
        %938 = vrot.lane.b32.xlu0 %v518, 120
        %v939 = vpop.permute.xlu0 %938
        %940 = vrot.lane.b32.xlu0 %v523, 120
        %v941 = vpop.permute.xlu0 %940
        %942 = vrot.lane.b32.xlu0 %v528, 120
        %v943 = vpop.permute.xlu0 %942
        %944 = vrot.lane.b32.xlu0 %v533, 120
        %v945 = vpop.permute.xlu0 %944
        %946 = vrot.lane.b32.xlu0 %v538, 120
        %v947 = vpop.permute.xlu0 %946
        %948 = vrot.lane.b32.xlu0 %v543, 120
        %v949 = vpop.permute.xlu0 %948
        %950 = vrot.lane.b32.xlu0 %v548, 120
        %v951 = vpop.permute.xlu0 %950
        %952 = vrot.lane.b32.xlu0 %v553, 120
        %v953 = vpop.permute.xlu0 %952
        %954 = vrot.lane.b32.xlu0 %v558, 120
        %v955 = vpop.permute.xlu0 %954
        %956 = vrot.lane.b32.xlu0 %v563, 120
        %v957 = vpop.permute.xlu0 %956
        %958 = vrot.lane.b32.xlu0 %v568, 120
        %v959 = vpop.permute.xlu0 %958
        %960 = vrot.lane.b32.xlu0 %v573, 120
        %v961 = vpop.permute.xlu0 %960
        %962 = vrot.lane.b32.xlu0 %v578, 120
        %v963 = vpop.permute.xlu0 %962
        %964 = vrot.lane.b32.xlu0 %v583, 120
        %v965 = vpop.permute.xlu0 %964
        %966 = vrot.lane.b32.xlu0 %v588, 120
        %v967 = vpop.permute.xlu0 %966
        %968 = vrot.lane.b32.xlu0 %v593, 120
        %v969 = vpop.permute.xlu0 %968
        %970 = vrot.lane.b32.xlu0 %v598, 120
        %v971 = vpop.permute.xlu0 %970
        %972 = vrot.lane.b32.xlu0 %v603, 120
        %v973 = vpop.permute.xlu0 %972
        %974 = vrot.lane.b32.xlu0 %v608, 120
        %v975 = vpop.permute.xlu0 %974
        %976 = vrot.lane.b32.xlu0 %v613, 120
        %v977 = vpop.permute.xlu0 %976
        %978 = vrot.lane.b32.xlu0 %v618, 120
        %v979 = vpop.permute.xlu0 %978
        %980 = vrot.lane.b32.xlu0 %v623, 120
        %v981 = vpop.permute.xlu0 %980
        %982 = vrot.lane.b32.xlu0 %v628, 120
        %v983 = vpop.permute.xlu0 %982
        %984 = vrot.lane.b32.xlu0 %v633, 120
        %v985 = vpop.permute.xlu0 %984
        %986 = vrot.lane.b32.xlu0 %v638, 120
        %v987 = vpop.permute.xlu0 %986
        %988 = vrot.lane.b32.xlu0 %v643, 120
        %v989 = vpop.permute.xlu0 %988
        %990 = vrot.lane.b32.xlu0 %v648, 120
        %v991 = vpop.permute.xlu0 %990
        %992 = vrot.lane.b32.xlu0 %v653, 120
        %v993 = vpop.permute.xlu0 %992
        %994 = vrot.lane.b32.xlu0 %v658, 120
        %v995 = vpop.permute.xlu0 %994
        %996 = vrot.lane.b32.xlu0 %v663, 120
        %v997 = vpop.permute.xlu0 %996
        %998 = vrot.lane.b32.xlu0 %v668, 120
        %v999 = vpop.permute.xlu0 %998
        %1000 = vrot.lane.b32.xlu0 %v673, 120
        %v1001 = vpop.permute.xlu0 %1000
        %1002 = vrot.lane.b32.xlu0 %v678, 120
        %v1003 = vpop.permute.xlu0 %1002
        %1004 = vrot.lane.b32.xlu0 %v683, 120
        %v1005 = vpop.permute.xlu0 %1004
        %1006 = vrot.lane.b32.xlu0 %v688, 120
        %v1007 = vpop.permute.xlu0 %1006
        %1008 = vrot.lane.b32.xlu0 %v693, 120
        %v1009 = vpop.permute.xlu0 %1008
        %1010 = vrot.lane.b32.xlu0 %v698, 120
        %v1011 = vpop.permute.xlu0 %1010
        %1012 = vrot.lane.b32.xlu0 %v703, 120
        %v1013 = vpop.permute.xlu0 %1012
        %1014 = vrot.lane.b32.xlu0 %v708, 120
        %v1015 = vpop.permute.xlu0 %1014
        %1016 = vrot.lane.b32.xlu0 %v713, 120
        %v1017 = vpop.permute.xlu0 %1016
        %1018 = vrot.lane.b32.xlu0 %v718, 120
        %v1019 = vpop.permute.xlu0 %1018
        %1020 = vrot.lane.b32.xlu0 %v723, 120
        %v1021 = vpop.permute.xlu0 %1020
        %1022 = vrot.lane.b32.xlu0 %v728, 120
        %v1023 = vpop.permute.xlu0 %1022
        %1024 = vrot.lane.b32.xlu0 %v733, 120
        %v1025 = vpop.permute.xlu0 %1024
        %1026 = vrot.lane.b32.xlu0 %v738, 120
        %v1027 = vpop.permute.xlu0 %1026
        %1028 = vrot.lane.b32.xlu0 %v743, 120
        %v1029 = vpop.permute.xlu0 %1028
        %1030 = vrot.lane.b32.xlu0 %v748, 120
        %v1031 = vpop.permute.xlu0 %1030
        %1032 = vrot.lane.b32.xlu0 %v753, 120
        %v1033 = vpop.permute.xlu0 %1032
        %1034 = vrot.lane.b32.xlu0 %v758, 120
        %v1035 = vpop.permute.xlu0 %1034
        %1036 = vrot.lane.b32.xlu0 %v763, 120
        %v1037 = vpop.permute.xlu0 %1036
        %1038 = vrot.lane.b32.xlu0 %v768, 120
        %v1039 = vpop.permute.xlu0 %1038
        %1040 = vrot.lane.b32.xlu0 %v773, 120
        %v1041 = vpop.permute.xlu0 %1040
        %1042 = vrot.lane.b32.xlu0 %v778, 120
        %v1043 = vpop.permute.xlu0 %1042
        %1044 = vrot.lane.b32.xlu0 %v783, 120
        %v1045 = vpop.permute.xlu0 %1044
        %1046 = vrot.lane.b32.xlu0 %v788, 120
        %v1047 = vpop.permute.xlu0 %1046
        %1048 = vrot.lane.b32.xlu0 %v793, 120
        %v1049 = vpop.permute.xlu0 %1048
        %1050 = vrot.lane.b32.xlu0 %v798, 120
        %v1051 = vpop.permute.xlu0 %1050
        %1052 = vrot.lane.b32.xlu0 %v803, 120
        %v1053 = vpop.permute.xlu0 %1052
        %s1116 = scalar_lea.vmem %s160, 16 [#allocation2]
        %1117 = vst.msk [vmem:[%s1116] sm:$0xff] %vm244, %v931
        %1118 = vst.msk [vmem:[%s1116 + $0x8] sm:$0xff] %vm244, %v933
        %1119 = vst.msk [vmem:[%s1116 + $0x20] sm:$0xff] %vm244, %v935
        %1120 = vst.msk [vmem:[%s1116 + $0x28] sm:$0xff] %vm244, %v937
        %1121 = vst.msk [vmem:[%s1116 + $0x40] sm:$0xff] %vm244, %v939
        %1122 = vst.msk [vmem:[%s1116 + $0x48] sm:$0xff] %vm244, %v941
        %1123 = vst.msk [vmem:[%s1116 + $0x60] sm:$0xff] %vm244, %v943
        %1124 = vst.msk [vmem:[%s1116 + $0x68] sm:$0xff] %vm244, %v945
        %1125 = vst.msk [vmem:[%s1116 + $0x80] sm:$0xff] %vm244, %v947
        %1126 = vst.msk [vmem:[%s1116 + $0x88] sm:$0xff] %vm244, %v949
        %1127 = vst.msk [vmem:[%s1116 + $0xa0] sm:$0xff] %vm244, %v951
        %1128 = vst.msk [vmem:[%s1116 + $0xa8] sm:$0xff] %vm244, %v953
        %1129 = vst.msk [vmem:[%s1116 + $0xc0] sm:$0xff] %vm244, %v955
        %1130 = vst.msk [vmem:[%s1116 + $0xc8] sm:$0xff] %vm244, %v957
        %1131 = vst.msk [vmem:[%s1116 + $0xe0] sm:$0xff] %vm244, %v959
        %1132 = vst.msk [vmem:[%s1116 + $0xe8] sm:$0xff] %vm244, %v961
        %1133 = vst.msk [vmem:[%s1116 + $0x100] sm:$0xff] %vm244, %v963
        %1134 = vst.msk [vmem:[%s1116 + $0x108] sm:$0xff] %vm244, %v965
        %1135 = vst.msk [vmem:[%s1116 + $0x120] sm:$0xff] %vm244, %v967
        %1136 = vst.msk [vmem:[%s1116 + $0x128] sm:$0xff] %vm244, %v969
        %1137 = vst.msk [vmem:[%s1116 + $0x140] sm:$0xff] %vm244, %v971
        %1138 = vst.msk [vmem:[%s1116 + $0x148] sm:$0xff] %vm244, %v973
        %1139 = vst.msk [vmem:[%s1116 + $0x160] sm:$0xff] %vm244, %v975
        %1140 = vst.msk [vmem:[%s1116 + $0x168] sm:$0xff] %vm244, %v977
        %1141 = vst.msk [vmem:[%s1116 + $0x180] sm:$0xff] %vm244, %v979
        %1142 = vst.msk [vmem:[%s1116 + $0x188] sm:$0xff] %vm244, %v981
        %1143 = vst.msk [vmem:[%s1116 + $0x1a0] sm:$0xff] %vm244, %v983
        %1144 = vst.msk [vmem:[%s1116 + $0x1a8] sm:$0xff] %vm244, %v985
        %1145 = vst.msk [vmem:[%s1116 + $0x1c0] sm:$0xff] %vm244, %v987
        %1146 = vst.msk [vmem:[%s1116 + $0x1c8] sm:$0xff] %vm244, %v989
        %1147 = vst.msk [vmem:[%s1116 + $0x1e0] sm:$0xff] %vm244, %v991
        %1148 = vst.msk [vmem:[%s1116 + $0x1e8] sm:$0xff] %vm244, %v993
        %1149 = vst.msk [vmem:[%s1116 + $0x200] sm:$0xff] %vm244, %v995
        %1150 = vst.msk [vmem:[%s1116 + $0x208] sm:$0xff] %vm244, %v997
        %1151 = vst.msk [vmem:[%s1116 + $0x220] sm:$0xff] %vm244, %v999
        %1152 = vst.msk [vmem:[%s1116 + $0x228] sm:$0xff] %vm244, %v1001
        %1153 = vst.msk [vmem:[%s1116 + $0x240] sm:$0xff] %vm244, %v1003
        %1154 = vst.msk [vmem:[%s1116 + $0x248] sm:$0xff] %vm244, %v1005
        %1155 = vst.msk [vmem:[%s1116 + $0x260] sm:$0xff] %vm244, %v1007
        %1156 = vst.msk [vmem:[%s1116 + $0x268] sm:$0xff] %vm244, %v1009
        %1157 = vst.msk [vmem:[%s1116 + $0x280] sm:$0xff] %vm244, %v1011
        %1158 = vst.msk [vmem:[%s1116 + $0x288] sm:$0xff] %vm244, %v1013
        %1159 = vst.msk [vmem:[%s1116 + $0x2a0] sm:$0xff] %vm244, %v1015
        %1160 = vst.msk [vmem:[%s1116 + $0x2a8] sm:$0xff] %vm244, %v1017
        %1161 = vst.msk [vmem:[%s1116 + $0x2c0] sm:$0xff] %vm244, %v1019
        %1162 = vst.msk [vmem:[%s1116 + $0x2c8] sm:$0xff] %vm244, %v1021
        %1163 = vst.msk [vmem:[%s1116 + $0x2e0] sm:$0xff] %vm244, %v1023
        %1164 = vst.msk [vmem:[%s1116 + $0x2e8] sm:$0xff] %vm244, %v1025
        %1165 = vst.msk [vmem:[%s1116 + $0x300] sm:$0xff] %vm244, %v1027
        %1166 = vst.msk [vmem:[%s1116 + $0x308] sm:$0xff] %vm244, %v1029
        %1167 = vst.msk [vmem:[%s1116 + $0x320] sm:$0xff] %vm244, %v1031
        %1168 = vst.msk [vmem:[%s1116 + $0x328] sm:$0xff] %vm244, %v1033
        %1169 = vst.msk [vmem:[%s1116 + $0x340] sm:$0xff] %vm244, %v1035
        %1170 = vst.msk [vmem:[%s1116 + $0x348] sm:$0xff] %vm244, %v1037
        %1171 = vst.msk [vmem:[%s1116 + $0x360] sm:$0xff] %vm244, %v1039
        %1172 = vst.msk [vmem:[%s1116 + $0x368] sm:$0xff] %vm244, %v1041
        %1173 = vst.msk [vmem:[%s1116 + $0x380] sm:$0xff] %vm244, %v1043
        %1174 = vst.msk [vmem:[%s1116 + $0x388] sm:$0xff] %vm244, %v1045
        %1175 = vst.msk [vmem:[%s1116 + $0x3a0] sm:$0xff] %vm244, %v1047
        %1176 = vst.msk [vmem:[%s1116 + $0x3a8] sm:$0xff] %vm244, %v1049
        %1177 = vst.msk [vmem:[%s1116 + $0x3c0] sm:$0xff] %vm244, %v1051
        %1178 = vst.msk [vmem:[%s1116 + $0x3c8] sm:$0xff] %vm244, %v1053
        %s1179 = sand.u32 %s90, 1
        %s1180 = sand.u32 %s90, 1
        %s1181 = smul.addr %s1180, 992
        %s1182 = scalar_lea.vmem [#allocation2], %s1181
        // Predicated region
        $region33: #{tpu_custom_call.1} parent=31 // pred_check
          %p1183 = pneg %p100
        $region34: #{tpu_custom_call.1} parent=31 // pred_check_branch
          %1185 = sbr.rel (%p1183) target = $region36
        $region35: #{tpu_custom_call.1} parent=31 // pred_region
          %s1186 = smul.u32 31, %s14
          %s1187 = ssub.s32 32, %s1186
          %p1188 = scmp.lt.s32.totalorder %s1187, 31
          %s1189 = scalar_select %p1188, %s1187, 31
          %s1190 = smul.u32 128, %s1189
          %s1191 = smul.u32 %s1190, 2
          %s1192 = smul.u32 %s1191, 2
          %p1193 = scmp.ne.s32.totalorder 0, %s1192
          %s1194 = smul.addr %s1186, 4
          %s1195 = smul.addr %s1194, 8
          %s1196 = scalar_lea.vmem %s3, %s1195
          %s1197 = smul.u32 %s1189, 4
          // Predicated region
          $region37: #{tpu_custom_call.1} parent=35 // pred_check
            %p1198 = pneg %p1193
          $region38: #{tpu_custom_call.1} parent=35 // pred_check_branch
            %1200 = sbr.rel (%p1198) target = $region40
          $region39: #{tpu_custom_call.1} parent=35 // pred_region
            // Predicated region
            $region41: #{tpu_custom_call.1} parent=39 // pred_check
              _
            $region42: #{tpu_custom_call.1} parent=39 // pred_check_branch
              %1202 = sbr.rel (0) target = $region44
            $region43: #{tpu_custom_call.1} parent=39 // pred_region
              // Predicated region
              $region63: #{tpu_custom_call.1} parent=43 // pred_check
                _
              $region64: #{tpu_custom_call.1} parent=43 // pred_check_branch
                %1377 = sbr.rel (0) target = $region66
              $region65: #{tpu_custom_call.1} parent=43 // pred_region
                %s1378 = sshrl.u32 %s1197, 6
                // While loop
                $region67: #{tpu_custom_call.1} parent=65 // loop_pre_header
                  _
                $region68: #{tpu_custom_call.1} parent=65 // loop_header
                  %s1380 = sphi 0, %s1382
                  %p1381 = scmp.ge.s32.totalorder %s1380, %s1378
                  %s1385 = sphi 0, %s1518
                  %s1386 = sphi %s1182, %s1521
                  %s1387 = sphi %s1196, %s1522
                $region69: #{tpu_custom_call.1} parent=65 // loop_header_branch
                  %1384 = sbr.rel (%p1381) target = $region73
                $region70: #{tpu_custom_call.1} parent=65 // loop_body
                  %v1388 = vld [vmem:[%s1386] sm:$0xff]
                  %1389 = vst [vmem:[%s1387] sm:$0xff] %v1388
                  %v1390 = vld [vmem:[%s1386 + $0x8] sm:$0xff]
                  %1391 = vst [vmem:[%s1387 + $0x8] sm:$0xff] %v1390
                  %v1392 = vld [vmem:[%s1386 + $0x10] sm:$0xff]
                  %1393 = vst [vmem:[%s1387 + $0x10] sm:$0xff] %v1392
                  %v1394 = vld [vmem:[%s1386 + $0x18] sm:$0xff]
                  %1395 = vst [vmem:[%s1387 + $0x18] sm:$0xff] %v1394
                  %v1396 = vld [vmem:[%s1386 + $0x20] sm:$0xff]
                  %1397 = vst [vmem:[%s1387 + $0x20] sm:$0xff] %v1396
                  %v1398 = vld [vmem:[%s1386 + $0x28] sm:$0xff]
                  %1399 = vst [vmem:[%s1387 + $0x28] sm:$0xff] %v1398
                  %v1400 = vld [vmem:[%s1386 + $0x30] sm:$0xff]
                  %1401 = vst [vmem:[%s1387 + $0x30] sm:$0xff] %v1400
                  %v1402 = vld [vmem:[%s1386 + $0x38] sm:$0xff]
                  %1403 = vst [vmem:[%s1387 + $0x38] sm:$0xff] %v1402
                  %v1404 = vld [vmem:[%s1386 + $0x40] sm:$0xff]
                  %1405 = vst [vmem:[%s1387 + $0x40] sm:$0xff] %v1404
                  %v1406 = vld [vmem:[%s1386 + $0x48] sm:$0xff]
                  %1407 = vst [vmem:[%s1387 + $0x48] sm:$0xff] %v1406
                  %v1408 = vld [vmem:[%s1386 + $0x50] sm:$0xff]
                  %1409 = vst [vmem:[%s1387 + $0x50] sm:$0xff] %v1408
                  %v1410 = vld [vmem:[%s1386 + $0x58] sm:$0xff]
                  %1411 = vst [vmem:[%s1387 + $0x58] sm:$0xff] %v1410
                  %v1412 = vld [vmem:[%s1386 + $0x60] sm:$0xff]
                  %1413 = vst [vmem:[%s1387 + $0x60] sm:$0xff] %v1412
                  %v1414 = vld [vmem:[%s1386 + $0x68] sm:$0xff]
                  %1415 = vst [vmem:[%s1387 + $0x68] sm:$0xff] %v1414
                  %v1416 = vld [vmem:[%s1386 + $0x70] sm:$0xff]
                  %1417 = vst [vmem:[%s1387 + $0x70] sm:$0xff] %v1416
                  %v1418 = vld [vmem:[%s1386 + $0x78] sm:$0xff]
                  %1419 = vst [vmem:[%s1387 + $0x78] sm:$0xff] %v1418
                  %v1420 = vld [vmem:[%s1386 + $0x80] sm:$0xff]
                  %1421 = vst [vmem:[%s1387 + $0x80] sm:$0xff] %v1420
                  %v1422 = vld [vmem:[%s1386 + $0x88] sm:$0xff]
                  %1423 = vst [vmem:[%s1387 + $0x88] sm:$0xff] %v1422
                  %v1424 = vld [vmem:[%s1386 + $0x90] sm:$0xff]
                  %1425 = vst [vmem:[%s1387 + $0x90] sm:$0xff] %v1424
                  %v1426 = vld [vmem:[%s1386 + $0x98] sm:$0xff]
                  %1427 = vst [vmem:[%s1387 + $0x98] sm:$0xff] %v1426
                  %v1428 = vld [vmem:[%s1386 + $0xa0] sm:$0xff]
                  %1429 = vst [vmem:[%s1387 + $0xa0] sm:$0xff] %v1428
                  %v1430 = vld [vmem:[%s1386 + $0xa8] sm:$0xff]
                  %1431 = vst [vmem:[%s1387 + $0xa8] sm:$0xff] %v1430
                  %v1432 = vld [vmem:[%s1386 + $0xb0] sm:$0xff]
                  %1433 = vst [vmem:[%s1387 + $0xb0] sm:$0xff] %v1432
                  %v1434 = vld [vmem:[%s1386 + $0xb8] sm:$0xff]
                  %1435 = vst [vmem:[%s1387 + $0xb8] sm:$0xff] %v1434
                  %v1436 = vld [vmem:[%s1386 + $0xc0] sm:$0xff]
                  %1437 = vst [vmem:[%s1387 + $0xc0] sm:$0xff] %v1436
                  %v1438 = vld [vmem:[%s1386 + $0xc8] sm:$0xff]
                  %1439 = vst [vmem:[%s1387 + $0xc8] sm:$0xff] %v1438
                  %v1440 = vld [vmem:[%s1386 + $0xd0] sm:$0xff]
                  %1441 = vst [vmem:[%s1387 + $0xd0] sm:$0xff] %v1440
                  %v1442 = vld [vmem:[%s1386 + $0xd8] sm:$0xff]
                  %1443 = vst [vmem:[%s1387 + $0xd8] sm:$0xff] %v1442
                  %v1444 = vld [vmem:[%s1386 + $0xe0] sm:$0xff]
                  %1445 = vst [vmem:[%s1387 + $0xe0] sm:$0xff] %v1444
                  %v1446 = vld [vmem:[%s1386 + $0xe8] sm:$0xff]
                  %1447 = vst [vmem:[%s1387 + $0xe8] sm:$0xff] %v1446
                  %v1448 = vld [vmem:[%s1386 + $0xf0] sm:$0xff]
                  %1449 = vst [vmem:[%s1387 + $0xf0] sm:$0xff] %v1448
                  %v1450 = vld [vmem:[%s1386 + $0xf8] sm:$0xff]
                  %1451 = vst [vmem:[%s1387 + $0xf8] sm:$0xff] %v1450
                  %v1452 = vld [vmem:[%s1386 + $0x100] sm:$0xff]
                  %1453 = vst [vmem:[%s1387 + $0x100] sm:$0xff] %v1452
                  %v1454 = vld [vmem:[%s1386 + $0x108] sm:$0xff]
                  %1455 = vst [vmem:[%s1387 + $0x108] sm:$0xff] %v1454
                  %v1456 = vld [vmem:[%s1386 + $0x110] sm:$0xff]
                  %1457 = vst [vmem:[%s1387 + $0x110] sm:$0xff] %v1456
                  %v1458 = vld [vmem:[%s1386 + $0x118] sm:$0xff]
                  %1459 = vst [vmem:[%s1387 + $0x118] sm:$0xff] %v1458
                  %v1460 = vld [vmem:[%s1386 + $0x120] sm:$0xff]
                  %1461 = vst [vmem:[%s1387 + $0x120] sm:$0xff] %v1460
                  %v1462 = vld [vmem:[%s1386 + $0x128] sm:$0xff]
                  %1463 = vst [vmem:[%s1387 + $0x128] sm:$0xff] %v1462
                  %v1464 = vld [vmem:[%s1386 + $0x130] sm:$0xff]
                  %1465 = vst [vmem:[%s1387 + $0x130] sm:$0xff] %v1464
                  %v1466 = vld [vmem:[%s1386 + $0x138] sm:$0xff]
                  %1467 = vst [vmem:[%s1387 + $0x138] sm:$0xff] %v1466
                  %v1468 = vld [vmem:[%s1386 + $0x140] sm:$0xff]
                  %1469 = vst [vmem:[%s1387 + $0x140] sm:$0xff] %v1468
                  %v1470 = vld [vmem:[%s1386 + $0x148] sm:$0xff]
                  %1471 = vst [vmem:[%s1387 + $0x148] sm:$0xff] %v1470
                  %v1472 = vld [vmem:[%s1386 + $0x150] sm:$0xff]
                  %1473 = vst [vmem:[%s1387 + $0x150] sm:$0xff] %v1472
                  %v1474 = vld [vmem:[%s1386 + $0x158] sm:$0xff]
                  %1475 = vst [vmem:[%s1387 + $0x158] sm:$0xff] %v1474
                  %v1476 = vld [vmem:[%s1386 + $0x160] sm:$0xff]
                  %1477 = vst [vmem:[%s1387 + $0x160] sm:$0xff] %v1476
                  %v1478 = vld [vmem:[%s1386 + $0x168] sm:$0xff]
                  %1479 = vst [vmem:[%s1387 + $0x168] sm:$0xff] %v1478
                  %v1480 = vld [vmem:[%s1386 + $0x170] sm:$0xff]
                  %1481 = vst [vmem:[%s1387 + $0x170] sm:$0xff] %v1480
                  %v1482 = vld [vmem:[%s1386 + $0x178] sm:$0xff]
                  %1483 = vst [vmem:[%s1387 + $0x178] sm:$0xff] %v1482
                  %v1484 = vld [vmem:[%s1386 + $0x180] sm:$0xff]
                  %1485 = vst [vmem:[%s1387 + $0x180] sm:$0xff] %v1484
                  %v1486 = vld [vmem:[%s1386 + $0x188] sm:$0xff]
                  %1487 = vst [vmem:[%s1387 + $0x188] sm:$0xff] %v1486
                  %v1488 = vld [vmem:[%s1386 + $0x190] sm:$0xff]
                  %1489 = vst [vmem:[%s1387 + $0x190] sm:$0xff] %v1488
                  %v1490 = vld [vmem:[%s1386 + $0x198] sm:$0xff]
                  %1491 = vst [vmem:[%s1387 + $0x198] sm:$0xff] %v1490
                  %v1492 = vld [vmem:[%s1386 + $0x1a0] sm:$0xff]
                  %1493 = vst [vmem:[%s1387 + $0x1a0] sm:$0xff] %v1492
                  %v1494 = vld [vmem:[%s1386 + $0x1a8] sm:$0xff]
                  %1495 = vst [vmem:[%s1387 + $0x1a8] sm:$0xff] %v1494
                  %v1496 = vld [vmem:[%s1386 + $0x1b0] sm:$0xff]
                  %1497 = vst [vmem:[%s1387 + $0x1b0] sm:$0xff] %v1496
                  %v1498 = vld [vmem:[%s1386 + $0x1b8] sm:$0xff]
                  %1499 = vst [vmem:[%s1387 + $0x1b8] sm:$0xff] %v1498
                  %v1500 = vld [vmem:[%s1386 + $0x1c0] sm:$0xff]
                  %1501 = vst [vmem:[%s1387 + $0x1c0] sm:$0xff] %v1500
                  %v1502 = vld [vmem:[%s1386 + $0x1c8] sm:$0xff]
                  %1503 = vst [vmem:[%s1387 + $0x1c8] sm:$0xff] %v1502
                  %v1504 = vld [vmem:[%s1386 + $0x1d0] sm:$0xff]
                  %1505 = vst [vmem:[%s1387 + $0x1d0] sm:$0xff] %v1504
                  %v1506 = vld [vmem:[%s1386 + $0x1d8] sm:$0xff]
                  %1507 = vst [vmem:[%s1387 + $0x1d8] sm:$0xff] %v1506
                  %v1508 = vld [vmem:[%s1386 + $0x1e0] sm:$0xff]
                  %1509 = vst [vmem:[%s1387 + $0x1e0] sm:$0xff] %v1508
                  %v1510 = vld [vmem:[%s1386 + $0x1e8] sm:$0xff]
                  %1511 = vst [vmem:[%s1387 + $0x1e8] sm:$0xff] %v1510
                  %v1512 = vld [vmem:[%s1386 + $0x1f0] sm:$0xff]
                  %1513 = vst [vmem:[%s1387 + $0x1f0] sm:$0xff] %v1512
                  %v1514 = vld [vmem:[%s1386 + $0x1f8] sm:$0xff]
                  %1515 = vst [vmem:[%s1387 + $0x1f8] sm:$0xff] %v1514
                  %s1516 = sadd.s32 1, %s1385
                  %p1517 = scmp.ge.s32.totalorder %s1516, %s1378
                  %s1518 = scalar_select %p1517, 0, %s1516
                  %s1519 = smul.u32 %s1518, 512
                  %s1520 = smul.u32 %s1518, 512
                  %s1521 = scalar_lea.vmem %s1182, %s1519 [#allocation2]
                  %s1522 = scalar_lea.vmem %s1196, %s1520
                $region71: #{tpu_custom_call.1} parent=65 // loop_footer
                  %s1382 = sadd.s32 %s1380, 1
                $region72: #{tpu_custom_call.1} parent=65 // loop_footer_branch
                  %1379 = sbr.rel target = $region68
                $region73: #{tpu_custom_call.1} parent=65 // loop_exit
                  _
                %s1523 = sshrl.u32 %s1197, 6
                %s1524 = sand.u32 %s1197, 63
                %s1525 = smul.u32 %s1523, 64
                %s1526 = smul.u32 8, %s1525
                %s1527 = scalar_lea.vmem %s1182, %s1526 [#allocation2]
                %s1528 = smul.u32 8, %s1525
                %s1529 = scalar_lea.vmem %s1196, %s1528
                // While loop
                $region74: #{tpu_custom_call.1} parent=65 // loop_pre_header
                  _
                $region75: #{tpu_custom_call.1} parent=65 // loop_header
                  %s1531 = sphi 0, %s1533
                  %p1532 = scmp.ge.s32.totalorder %s1531, %s1524
                  %s1536 = sphi 0, %s1543
                  %s1537 = sphi %s1527, %s1546
                  %s1538 = sphi %s1529, %s1547
                $region76: #{tpu_custom_call.1} parent=65 // loop_header_branch
                  %1535 = sbr.rel (%p1532) target = $region80
                $region77: #{tpu_custom_call.1} parent=65 // loop_body
                  %v1539 = vld [vmem:[%s1537] sm:$0xff]
                  %1540 = vst [vmem:[%s1538] sm:$0xff] %v1539
                  %s1541 = sadd.s32 1, %s1536
                  %p1542 = scmp.ge.s32.totalorder %s1541, %s1524
                  %s1543 = scalar_select %p1542, 0, %s1541
                  %s1544 = smul.u32 %s1543, 8
                  %s1545 = smul.u32 %s1543, 8
                  %s1546 = scalar_lea.vmem %s1527, %s1544 [#allocation2]
                  %s1547 = scalar_lea.vmem %s1529, %s1545
                $region78: #{tpu_custom_call.1} parent=65 // loop_footer
                  %s1533 = sadd.s32 %s1531, 1
                $region79: #{tpu_custom_call.1} parent=65 // loop_footer_branch
                  %1530 = sbr.rel target = $region75
                $region80: #{tpu_custom_call.1} parent=65 // loop_exit
                  _
              $region66: #{tpu_custom_call.1} parent=43 // pred_fallthru
                _
              // Predicated region
              $region81: #{tpu_custom_call.1} parent=43 // pred_check
                _
              $region82: #{tpu_custom_call.1} parent=43 // pred_check_branch
                %1549 = sbr.rel target = $region84
              $region83: #{tpu_custom_call.1} parent=43 // pred_region
                _
              $region84: #{tpu_custom_call.1} parent=43 // pred_fallthru
                _
            $region44: #{tpu_custom_call.1} parent=39 // pred_fallthru
              _
            // Predicated region
            $region45: #{tpu_custom_call.1} parent=39 // pred_check
              _
            $region46: #{tpu_custom_call.1} parent=39 // pred_check_branch
              %1204 = sbr.rel target = $region48
            $region47: #{tpu_custom_call.1} parent=39 // pred_region
              %s1206 = sshrl.u32 %s1197, 6
              // While loop
              $region49: #{tpu_custom_call.1} parent=47 // loop_pre_header
                _
              $region50: #{tpu_custom_call.1} parent=47 // loop_header
                %s1208 = sphi 0, %s1210
                %p1209 = scmp.ge.s32.totalorder %s1208, %s1206
                %s1213 = sphi 0, %s1346
                %s1214 = sphi %s1182, %s1349
                %s1215 = sphi %s1196, %s1350
              $region51: #{tpu_custom_call.1} parent=47 // loop_header_branch
                %1212 = sbr.rel (%p1209) target = $region55
              $region52: #{tpu_custom_call.1} parent=47 // loop_body
                %v1216 = vld [vmem:[%s1214] sm:$0xff]
                %1217 = vst [vmem:[%s1215] sm:$0xff] %v1216
                %v1218 = vld [vmem:[%s1214 + $0x8] sm:$0xff]
                %1219 = vst [vmem:[%s1215 + $0x8] sm:$0xff] %v1218
                %v1220 = vld [vmem:[%s1214 + $0x10] sm:$0xff]
                %1221 = vst [vmem:[%s1215 + $0x10] sm:$0xff] %v1220
                %v1222 = vld [vmem:[%s1214 + $0x18] sm:$0xff]
                %1223 = vst [vmem:[%s1215 + $0x18] sm:$0xff] %v1222
                %v1224 = vld [vmem:[%s1214 + $0x20] sm:$0xff]
                %1225 = vst [vmem:[%s1215 + $0x20] sm:$0xff] %v1224
                %v1226 = vld [vmem:[%s1214 + $0x28] sm:$0xff]
                %1227 = vst [vmem:[%s1215 + $0x28] sm:$0xff] %v1226
                %v1228 = vld [vmem:[%s1214 + $0x30] sm:$0xff]
                %1229 = vst [vmem:[%s1215 + $0x30] sm:$0xff] %v1228
                %v1230 = vld [vmem:[%s1214 + $0x38] sm:$0xff]
                %1231 = vst [vmem:[%s1215 + $0x38] sm:$0xff] %v1230
                %v1232 = vld [vmem:[%s1214 + $0x40] sm:$0xff]
                %1233 = vst [vmem:[%s1215 + $0x40] sm:$0xff] %v1232
                %v1234 = vld [vmem:[%s1214 + $0x48] sm:$0xff]
                %1235 = vst [vmem:[%s1215 + $0x48] sm:$0xff] %v1234
                %v1236 = vld [vmem:[%s1214 + $0x50] sm:$0xff]
                %1237 = vst [vmem:[%s1215 + $0x50] sm:$0xff] %v1236
                %v1238 = vld [vmem:[%s1214 + $0x58] sm:$0xff]
                %1239 = vst [vmem:[%s1215 + $0x58] sm:$0xff] %v1238
                %v1240 = vld [vmem:[%s1214 + $0x60] sm:$0xff]
                %1241 = vst [vmem:[%s1215 + $0x60] sm:$0xff] %v1240
                %v1242 = vld [vmem:[%s1214 + $0x68] sm:$0xff]
                %1243 = vst [vmem:[%s1215 + $0x68] sm:$0xff] %v1242
                %v1244 = vld [vmem:[%s1214 + $0x70] sm:$0xff]
                %1245 = vst [vmem:[%s1215 + $0x70] sm:$0xff] %v1244
                %v1246 = vld [vmem:[%s1214 + $0x78] sm:$0xff]
                %1247 = vst [vmem:[%s1215 + $0x78] sm:$0xff] %v1246
                %v1248 = vld [vmem:[%s1214 + $0x80] sm:$0xff]
                %1249 = vst [vmem:[%s1215 + $0x80] sm:$0xff] %v1248
                %v1250 = vld [vmem:[%s1214 + $0x88] sm:$0xff]
                %1251 = vst [vmem:[%s1215 + $0x88] sm:$0xff] %v1250
                %v1252 = vld [vmem:[%s1214 + $0x90] sm:$0xff]
                %1253 = vst [vmem:[%s1215 + $0x90] sm:$0xff] %v1252
                %v1254 = vld [vmem:[%s1214 + $0x98] sm:$0xff]
                %1255 = vst [vmem:[%s1215 + $0x98] sm:$0xff] %v1254
                %v1256 = vld [vmem:[%s1214 + $0xa0] sm:$0xff]
                %1257 = vst [vmem:[%s1215 + $0xa0] sm:$0xff] %v1256
                %v1258 = vld [vmem:[%s1214 + $0xa8] sm:$0xff]
                %1259 = vst [vmem:[%s1215 + $0xa8] sm:$0xff] %v1258
                %v1260 = vld [vmem:[%s1214 + $0xb0] sm:$0xff]
                %1261 = vst [vmem:[%s1215 + $0xb0] sm:$0xff] %v1260
                %v1262 = vld [vmem:[%s1214 + $0xb8] sm:$0xff]
                %1263 = vst [vmem:[%s1215 + $0xb8] sm:$0xff] %v1262
                %v1264 = vld [vmem:[%s1214 + $0xc0] sm:$0xff]
                %1265 = vst [vmem:[%s1215 + $0xc0] sm:$0xff] %v1264
                %v1266 = vld [vmem:[%s1214 + $0xc8] sm:$0xff]
                %1267 = vst [vmem:[%s1215 + $0xc8] sm:$0xff] %v1266
                %v1268 = vld [vmem:[%s1214 + $0xd0] sm:$0xff]
                %1269 = vst [vmem:[%s1215 + $0xd0] sm:$0xff] %v1268
                %v1270 = vld [vmem:[%s1214 + $0xd8] sm:$0xff]
                %1271 = vst [vmem:[%s1215 + $0xd8] sm:$0xff] %v1270
                %v1272 = vld [vmem:[%s1214 + $0xe0] sm:$0xff]
                %1273 = vst [vmem:[%s1215 + $0xe0] sm:$0xff] %v1272
                %v1274 = vld [vmem:[%s1214 + $0xe8] sm:$0xff]
                %1275 = vst [vmem:[%s1215 + $0xe8] sm:$0xff] %v1274
                %v1276 = vld [vmem:[%s1214 + $0xf0] sm:$0xff]
                %1277 = vst [vmem:[%s1215 + $0xf0] sm:$0xff] %v1276
                %v1278 = vld [vmem:[%s1214 + $0xf8] sm:$0xff]
                %1279 = vst [vmem:[%s1215 + $0xf8] sm:$0xff] %v1278
                %v1280 = vld [vmem:[%s1214 + $0x100] sm:$0xff]
                %1281 = vst [vmem:[%s1215 + $0x100] sm:$0xff] %v1280
                %v1282 = vld [vmem:[%s1214 + $0x108] sm:$0xff]
                %1283 = vst [vmem:[%s1215 + $0x108] sm:$0xff] %v1282
                %v1284 = vld [vmem:[%s1214 + $0x110] sm:$0xff]
                %1285 = vst [vmem:[%s1215 + $0x110] sm:$0xff] %v1284
                %v1286 = vld [vmem:[%s1214 + $0x118] sm:$0xff]
                %1287 = vst [vmem:[%s1215 + $0x118] sm:$0xff] %v1286
                %v1288 = vld [vmem:[%s1214 + $0x120] sm:$0xff]
                %1289 = vst [vmem:[%s1215 + $0x120] sm:$0xff] %v1288
                %v1290 = vld [vmem:[%s1214 + $0x128] sm:$0xff]
                %1291 = vst [vmem:[%s1215 + $0x128] sm:$0xff] %v1290
                %v1292 = vld [vmem:[%s1214 + $0x130] sm:$0xff]
                %1293 = vst [vmem:[%s1215 + $0x130] sm:$0xff] %v1292
                %v1294 = vld [vmem:[%s1214 + $0x138] sm:$0xff]
                %1295 = vst [vmem:[%s1215 + $0x138] sm:$0xff] %v1294
                %v1296 = vld [vmem:[%s1214 + $0x140] sm:$0xff]
                %1297 = vst [vmem:[%s1215 + $0x140] sm:$0xff] %v1296
                %v1298 = vld [vmem:[%s1214 + $0x148] sm:$0xff]
                %1299 = vst [vmem:[%s1215 + $0x148] sm:$0xff] %v1298
                %v1300 = vld [vmem:[%s1214 + $0x150] sm:$0xff]
                %1301 = vst [vmem:[%s1215 + $0x150] sm:$0xff] %v1300
                %v1302 = vld [vmem:[%s1214 + $0x158] sm:$0xff]
                %1303 = vst [vmem:[%s1215 + $0x158] sm:$0xff] %v1302
                %v1304 = vld [vmem:[%s1214 + $0x160] sm:$0xff]
                %1305 = vst [vmem:[%s1215 + $0x160] sm:$0xff] %v1304
                %v1306 = vld [vmem:[%s1214 + $0x168] sm:$0xff]
                %1307 = vst [vmem:[%s1215 + $0x168] sm:$0xff] %v1306
                %v1308 = vld [vmem:[%s1214 + $0x170] sm:$0xff]
                %1309 = vst [vmem:[%s1215 + $0x170] sm:$0xff] %v1308
                %v1310 = vld [vmem:[%s1214 + $0x178] sm:$0xff]
                %1311 = vst [vmem:[%s1215 + $0x178] sm:$0xff] %v1310
                %v1312 = vld [vmem:[%s1214 + $0x180] sm:$0xff]
                %1313 = vst [vmem:[%s1215 + $0x180] sm:$0xff] %v1312
                %v1314 = vld [vmem:[%s1214 + $0x188] sm:$0xff]
                %1315 = vst [vmem:[%s1215 + $0x188] sm:$0xff] %v1314
                %v1316 = vld [vmem:[%s1214 + $0x190] sm:$0xff]
                %1317 = vst [vmem:[%s1215 + $0x190] sm:$0xff] %v1316
                %v1318 = vld [vmem:[%s1214 + $0x198] sm:$0xff]
                %1319 = vst [vmem:[%s1215 + $0x198] sm:$0xff] %v1318
                %v1320 = vld [vmem:[%s1214 + $0x1a0] sm:$0xff]
                %1321 = vst [vmem:[%s1215 + $0x1a0] sm:$0xff] %v1320
                %v1322 = vld [vmem:[%s1214 + $0x1a8] sm:$0xff]
                %1323 = vst [vmem:[%s1215 + $0x1a8] sm:$0xff] %v1322
                %v1324 = vld [vmem:[%s1214 + $0x1b0] sm:$0xff]
                %1325 = vst [vmem:[%s1215 + $0x1b0] sm:$0xff] %v1324
                %v1326 = vld [vmem:[%s1214 + $0x1b8] sm:$0xff]
                %1327 = vst [vmem:[%s1215 + $0x1b8] sm:$0xff] %v1326
                %v1328 = vld [vmem:[%s1214 + $0x1c0] sm:$0xff]
                %1329 = vst [vmem:[%s1215 + $0x1c0] sm:$0xff] %v1328
                %v1330 = vld [vmem:[%s1214 + $0x1c8] sm:$0xff]
                %1331 = vst [vmem:[%s1215 + $0x1c8] sm:$0xff] %v1330
                %v1332 = vld [vmem:[%s1214 + $0x1d0] sm:$0xff]
                %1333 = vst [vmem:[%s1215 + $0x1d0] sm:$0xff] %v1332
                %v1334 = vld [vmem:[%s1214 + $0x1d8] sm:$0xff]
                %1335 = vst [vmem:[%s1215 + $0x1d8] sm:$0xff] %v1334
                %v1336 = vld [vmem:[%s1214 + $0x1e0] sm:$0xff]
                %1337 = vst [vmem:[%s1215 + $0x1e0] sm:$0xff] %v1336
                %v1338 = vld [vmem:[%s1214 + $0x1e8] sm:$0xff]
                %1339 = vst [vmem:[%s1215 + $0x1e8] sm:$0xff] %v1338
                %v1340 = vld [vmem:[%s1214 + $0x1f0] sm:$0xff]
                %1341 = vst [vmem:[%s1215 + $0x1f0] sm:$0xff] %v1340
                %v1342 = vld [vmem:[%s1214 + $0x1f8] sm:$0xff]
                %1343 = vst [vmem:[%s1215 + $0x1f8] sm:$0xff] %v1342
                %s1344 = sadd.s32 1, %s1213
                %p1345 = scmp.ge.s32.totalorder %s1344, %s1206
                %s1346 = scalar_select %p1345, 0, %s1344
                %s1347 = smul.u32 %s1346, 512
                %s1348 = smul.u32 %s1346, 512
                %s1349 = scalar_lea.vmem %s1182, %s1347 [#allocation2]
                %s1350 = scalar_lea.vmem %s1196, %s1348
              $region53: #{tpu_custom_call.1} parent=47 // loop_footer
                %s1210 = sadd.s32 %s1208, 1
              $region54: #{tpu_custom_call.1} parent=47 // loop_footer_branch
                %1207 = sbr.rel target = $region50
              $region55: #{tpu_custom_call.1} parent=47 // loop_exit
                _
              %s1351 = sshrl.u32 %s1197, 6
              %s1352 = sand.u32 %s1197, 63
              %s1353 = smul.u32 %s1351, 64
              %s1354 = smul.u32 8, %s1353
              %s1355 = scalar_lea.vmem %s1182, %s1354 [#allocation2]
              %s1356 = smul.u32 8, %s1353
              %s1357 = scalar_lea.vmem %s1196, %s1356
              // While loop
              $region56: #{tpu_custom_call.1} parent=47 // loop_pre_header
                _
              $region57: #{tpu_custom_call.1} parent=47 // loop_header
                %s1359 = sphi 0, %s1361
                %p1360 = scmp.ge.s32.totalorder %s1359, %s1352
                %s1364 = sphi 0, %s1371
                %s1365 = sphi %s1355, %s1374
                %s1366 = sphi %s1357, %s1375
              $region58: #{tpu_custom_call.1} parent=47 // loop_header_branch
                %1363 = sbr.rel (%p1360) target = $region62
              $region59: #{tpu_custom_call.1} parent=47 // loop_body
                %v1367 = vld [vmem:[%s1365] sm:$0xff]
                %1368 = vst [vmem:[%s1366] sm:$0xff] %v1367
                %s1369 = sadd.s32 1, %s1364
                %p1370 = scmp.ge.s32.totalorder %s1369, %s1352
                %s1371 = scalar_select %p1370, 0, %s1369
                %s1372 = smul.u32 %s1371, 8
                %s1373 = smul.u32 %s1371, 8
                %s1374 = scalar_lea.vmem %s1355, %s1372 [#allocation2]
                %s1375 = scalar_lea.vmem %s1357, %s1373
              $region60: #{tpu_custom_call.1} parent=47 // loop_footer
                %s1361 = sadd.s32 %s1359, 1
              $region61: #{tpu_custom_call.1} parent=47 // loop_footer_branch
                %1358 = sbr.rel target = $region57
              $region62: #{tpu_custom_call.1} parent=47 // loop_exit
                _
            $region48: #{tpu_custom_call.1} parent=39 // pred_fallthru
              _
          $region40: #{tpu_custom_call.1} parent=35 // pred_fallthru
            _
          %1550 = vnop
        $region36: #{tpu_custom_call.1} parent=31 // pred_fallthru
          _
      $region32: #{tpu_custom_call.1} parent=5 // pred_fallthru
        _
      %p1551 = scmp.le.s32.totalorder 2, %s9
      // Predicated region
      $region85: #{tpu_custom_call.1} parent=5 // pred_check
        %p1552 = pneg %p1551
      $region86: #{tpu_custom_call.1} parent=5 // pred_check_branch
        %1554 = sbr.rel (%p1552) target = $region88
      $region87: #{tpu_custom_call.1} parent=5 // pred_region
        %s1555 = ssub.s32 %s9, 2
        // Predicated region
        $region89: #{tpu_custom_call.1} parent=87 // pred_check
          %p1556 = pneg %p106
        $region90: #{tpu_custom_call.1} parent=87 // pred_check_branch
          %1558 = sbr.rel (%p1556) target = $region92
        $region91: #{tpu_custom_call.1} parent=87 // pred_region
          %s1559 = sand.u32 %s91, 1
          %s1560 = sand.u32 %s91, 1
          %s1561 = smul.addr %s1560, 992
          %s1562 = scalar_lea.vmem [#allocation2], %s1561
        $region92: #{tpu_custom_call.1} parent=87 // pred_fallthru
          _
      $region88: #{tpu_custom_call.1} parent=5 // pred_fallthru
        _
    $region6: #{tpu_custom_call.1} parent=1 // loop_footer
      %s13 = sadd.s32 1, %s9
    $region7: #{tpu_custom_call.1} parent=1 // loop_footer_branch
      %8 = sbr.rel target = $region3
    $region8: #{tpu_custom_call.1} parent=1 // loop_exit
      _

</llo_original>
